<compile_context>
chip_gen: v6e
topology: v6e:2x2x1
jax: 0.10.0
libtpu: 0.0.40
codegen_flags: <defaults>
</compile_context>

<pallas_src>
import functools

import jax
import jax.numpy as jnp
from jax import lax
from jax.experimental import pallas as pl
from jax.experimental.pallas import tpu as pltpu


def _ds_conv_kernel(x_ref, w_ref, o_ref, *, kh, kw, h_out, w_out):
    # x_ref: (1, H, W, Cin)        one image, NHWC (Cin on lanes)
    # w_ref: (Cout, KH*KW*Cin)     folded depthwise*pointwise weights
    # o_ref: (1, Cout, Hout*Wout)  lane-dense, NCHW-flattened output
    cin = x_ref.shape[-1]

    # im2col: read the KH*KW shifted windows straight from the ref and stack
    # them along the channel/lane axis -> (Hout, Wout, KH*KW*Cin).
    cols = []
    for i in range(kh):
        for j in range(kw):
            cols.append(x_ref[0, i:i + h_out, j:j + w_out, :])
    patches = jnp.concatenate(cols, axis=-1)

    # Collapse spatial dims (lane dim unchanged) -> (Hout*Wout, KH*KW*Cin).
    patches2d = patches.reshape(h_out * w_out, kh * kw * cin).astype(jnp.float32)

    # Single MXU matmul, contracting K on both operands' last dims so the result
    # comes out (Cout, Hout*Wout): lane-dense and already in NCHW order.
    acc = lax.dot_general(
        w_ref[...].astype(jnp.float32),      # (Cout, K)
        patches2d,                           # (Hout*Wout, K)
        dimension_numbers=(((1,), (1,)), ((), ())),
        preferred_element_type=jnp.float32,
    )                                        # (Cout, Hout*Wout)
    o_ref[0] = acc.astype(o_ref.dtype)


def depthwise_separable_conv(x_nchw, dw_weight, pw_weight, kernel_size=3):
    """x_nchw: (N, Cin, H, W); dw_weight: (Cin, KH, KW); pw_weight: (Cout, Cin)."""
    n, cin, h, w = x_nchw.shape
    cout = pw_weight.shape[0]
    kh = kw = kernel_size
    h_out, w_out = h - kh + 1, w - kw + 1

    # NHWC so the channel contraction sits on the lane axis inside the kernel.
    x_nhwc = jnp.transpose(x_nchw, (0, 2, 3, 1))          # (N, H, W, Cin)

    # Fold the depthwise taps into the pointwise weights (done once, in XLA):
    #   w_comb[o, (i*KW + j)*Cin + c] = pw[o, c] * dw[c, i, j]
    w_comb = jnp.einsum("oc,cij->oijc", pw_weight, dw_weight)
    w_comb = w_comb.reshape(cout, kh * kw * cin)

    kernel = functools.partial(
        _ds_conv_kernel, kh=kh, kw=kw, h_out=h_out, w_out=w_out)

    out_flat = pl.pallas_call(
        kernel,
        out_shape=jax.ShapeDtypeStruct((n, cout, h_out * w_out), x_nchw.dtype),
        grid_spec=pltpu.PrefetchScalarGridSpec(
            num_scalar_prefetch=0,
            grid=(n,),
            in_specs=[
                pl.BlockSpec((1, h, w, cin), lambda b: (b, 0, 0, 0)),
                pl.BlockSpec((cout, kh * kw * cin), lambda b: (0, 0)),
            ],
            out_specs=pl.BlockSpec((1, cout, h_out * w_out), lambda b: (b, 0, 0)),
        ),
        compiler_params=pltpu.CompilerParams(
            dimension_semantics=("parallel",),
            vmem_limit_bytes=32 * 1024 * 1024,
        ),
    )(x_nhwc, w_comb)

    # (N, Cout, Hout*Wout) -> (N, Cout, Hout, Wout): pure reshape, no transpose.
    return out_flat.reshape(n, cout, h_out, w_out)


def _reference(x_nchw, dw_weight, pw_weight):
    # Pure-JAX reference matching PyTorch semantics (NCHW, groups=Cin then 1x1).
    cin = x_nchw.shape[1]
    dw_k = dw_weight[:, None, :, :]  # (Cin, 1, KH, KW) -> OIHW with groups=Cin
    y = lax.conv_general_dilated(
        x_nchw, dw_k, window_strides=(1, 1), padding="VALID",
        dimension_numbers=("NCHW", "OIHW", "NCHW"), feature_group_count=cin)
    pw_k = pw_weight[:, :, None, None]  # (Cout, Cin, 1, 1)
    return lax.conv_general_dilated(
        y, pw_k, window_strides=(1, 1), padding="VALID",
        dimension_numbers=("NCHW", "OIHW", "NCHW"))


if __name__ == "__main__":
    key = jax.random.PRNGKey(0)
    k_x, k_dw, k_pw = jax.random.split(key, 3)

    N, Cin, Cout, H, W, K = 2, 4, 8, 16, 16, 3

    x = jax.random.normal(k_x, (N, Cin, H, W), dtype=jnp.float32)
    dw_weight = jax.random.normal(k_dw, (Cin, K, K), dtype=jnp.float32) * 0.1
    pw_weight = jax.random.normal(k_pw, (Cout, Cin), dtype=jnp.float32) * 0.1

    out = depthwise_separable_conv(x, dw_weight, pw_weight, kernel_size=K)
    out = jax.block_until_ready(out)

    ref = _reference(x, dw_weight, pw_weight)
    assert out.shape == (N, Cout, H - K + 1, W - K + 1), out.shape
    assert jnp.allclose(out, ref, atol=1e-4, rtol=1e-3), "mismatch vs reference"

    print("KERNEL_OK")
</pallas_src>

<mosaic_0001>
module attributes {stable_mosaic.version = 11 : i64} {
  func.func @_ds_conv_kernel(%arg0: i32, %arg1: memref<1x16x16x4xf32, #tpu.memory_space<vmem>>, %arg2: memref<8x36xf32, #tpu.memory_space<vmem>>, %arg3: memref<1x8x196xf32, #tpu.memory_space<vmem>>) attributes {dimension_semantics = [#tpu.dimension_semantics<parallel>], iteration_bounds = array<i64: 2>, scalar_prefetch = 0 : i64, scratch_operands = 0 : i64, tpu.core_type = #tpu.core_type<tc>, window_params = [{transform_indices = @transform_0, window_bounds = array<i64: 1, 16, 16, 4>}, {pipeline_mode = #tpu.pipeline_mode<synchronous>, transform_indices = @transform_1, window_bounds = array<i64: 8, 36>}, {transform_indices = @transform_2, window_bounds = array<i64: 1, 8, 196>}]} {
    %c0 = arith.constant 0 : index
    %c0_0 = arith.constant 0 : index
    %c0_1 = arith.constant 0 : index
    %c0_2 = arith.constant 0 : index
    %0 = vector.load %arg1[%c0, %c0_0, %c0_1, %c0_2] : memref<1x16x16x4xf32, #tpu.memory_space<vmem>>, vector<1x14x14x4xf32>
    %1 = vector.shape_cast %0 : vector<1x14x14x4xf32> to vector<14x14x4xf32>
    %c0_3 = arith.constant 0 : index
    %c0_4 = arith.constant 0 : index
    %c1 = arith.constant 1 : index
    %c0_5 = arith.constant 0 : index
    %2 = vector.load %arg1[%c0_3, %c0_4, %c1, %c0_5] : memref<1x16x16x4xf32, #tpu.memory_space<vmem>>, vector<1x14x14x4xf32>
    %3 = vector.shape_cast %2 : vector<1x14x14x4xf32> to vector<14x14x4xf32>
    %c0_6 = arith.constant 0 : index
    %c0_7 = arith.constant 0 : index
    %c2 = arith.constant 2 : index
    %c0_8 = arith.constant 0 : index
    %4 = vector.load %arg1[%c0_6, %c0_7, %c2, %c0_8] : memref<1x16x16x4xf32, #tpu.memory_space<vmem>>, vector<1x14x14x4xf32>
    %5 = vector.shape_cast %4 : vector<1x14x14x4xf32> to vector<14x14x4xf32>
    %c0_9 = arith.constant 0 : index
    %c1_10 = arith.constant 1 : index
    %c0_11 = arith.constant 0 : index
    %c0_12 = arith.constant 0 : index
    %6 = vector.load %arg1[%c0_9, %c1_10, %c0_11, %c0_12] : memref<1x16x16x4xf32, #tpu.memory_space<vmem>>, vector<1x14x14x4xf32>
    %7 = vector.shape_cast %6 : vector<1x14x14x4xf32> to vector<14x14x4xf32>
    %c0_13 = arith.constant 0 : index
    %c1_14 = arith.constant 1 : index
    %c1_15 = arith.constant 1 : index
    %c0_16 = arith.constant 0 : index
    %8 = vector.load %arg1[%c0_13, %c1_14, %c1_15, %c0_16] : memref<1x16x16x4xf32, #tpu.memory_space<vmem>>, vector<1x14x14x4xf32>
    %9 = vector.shape_cast %8 : vector<1x14x14x4xf32> to vector<14x14x4xf32>
    %c0_17 = arith.constant 0 : index
    %c1_18 = arith.constant 1 : index
    %c2_19 = arith.constant 2 : index
    %c0_20 = arith.constant 0 : index
    %10 = vector.load %arg1[%c0_17, %c1_18, %c2_19, %c0_20] : memref<1x16x16x4xf32, #tpu.memory_space<vmem>>, vector<1x14x14x4xf32>
    %11 = vector.shape_cast %10 : vector<1x14x14x4xf32> to vector<14x14x4xf32>
    %c0_21 = arith.constant 0 : index
    %c2_22 = arith.constant 2 : index
    %c0_23 = arith.constant 0 : index
    %c0_24 = arith.constant 0 : index
    %12 = vector.load %arg1[%c0_21, %c2_22, %c0_23, %c0_24] : memref<1x16x16x4xf32, #tpu.memory_space<vmem>>, vector<1x14x14x4xf32>
    %13 = vector.shape_cast %12 : vector<1x14x14x4xf32> to vector<14x14x4xf32>
    %c0_25 = arith.constant 0 : index
    %c2_26 = arith.constant 2 : index
    %c1_27 = arith.constant 1 : index
    %c0_28 = arith.constant 0 : index
    %14 = vector.load %arg1[%c0_25, %c2_26, %c1_27, %c0_28] : memref<1x16x16x4xf32, #tpu.memory_space<vmem>>, vector<1x14x14x4xf32>
    %15 = vector.shape_cast %14 : vector<1x14x14x4xf32> to vector<14x14x4xf32>
    %c0_29 = arith.constant 0 : index
    %c2_30 = arith.constant 2 : index
    %c2_31 = arith.constant 2 : index
    %c0_32 = arith.constant 0 : index
    %16 = vector.load %arg1[%c0_29, %c2_30, %c2_31, %c0_32] : memref<1x16x16x4xf32, #tpu.memory_space<vmem>>, vector<1x14x14x4xf32>
    %17 = vector.shape_cast %16 : vector<1x14x14x4xf32> to vector<14x14x4xf32>
    %18 = tpu.concatenate %1, %3, %5, %7, %9, %11, %13, %15, %17 in 2 : vector<14x14x4xf32>, vector<14x14x4xf32>, vector<14x14x4xf32>, vector<14x14x4xf32>, vector<14x14x4xf32>, vector<14x14x4xf32>, vector<14x14x4xf32>, vector<14x14x4xf32>, vector<14x14x4xf32> -> vector<14x14x36xf32>
    %19 = vector.shape_cast %18 : vector<14x14x36xf32> to vector<196x36xf32>
    %c0_33 = arith.constant 0 : index
    %c0_34 = arith.constant 0 : index
    %20 = vector.load %arg2[%c0_33, %c0_34] : memref<8x36xf32, #tpu.memory_space<vmem>>, vector<8x36xf32>
    %cst = arith.constant dense<0.000000e+00> : vector<8x196xf32>
    %21 = tpu.matmul %20, %19, %cst {dimension_numbers = #tpu.dot_dimension_numbers<[1], [1], [0], [0], [0, 0, 1, 0], [], []>} : vector<8x36xf32>, vector<196x36xf32>, vector<8x196xf32> -> vector<8x196xf32>
    %c0_35 = arith.constant 0 : index
    %c0_36 = arith.constant 0 : index
    %c0_37 = arith.constant 0 : index
    %22 = vector.load %arg3[%c0_35, %c0_36, %c0_37] : memref<1x8x196xf32, #tpu.memory_space<vmem>>, vector<1x8x196xf32>
    %23 = vector.shape_cast %22 : vector<1x8x196xf32> to vector<8x196xf32>
    %24 = vector.shape_cast %21 : vector<8x196xf32> to vector<1x8x196xf32>
    tpu.vector_store %arg3[%c0_35, %c0_36, %c0_37], %24 {strides = array<i32>} : memref<1x8x196xf32, #tpu.memory_space<vmem>>, vector<1x8x196xf32>,
    return
  }
  func.func @transform_0(%arg0: i32) -> (i32, i32, i32, i32) {
    %c0_i32 = arith.constant 0 : i32
    %c0_i32_0 = arith.constant 0 : i32
    %c0_i32_1 = arith.constant 0 : i32
    %c0_i32_2 = arith.constant 0 : i32
    return %arg0, %c0_i32, %c0_i32_0, %c0_i32_1 : i32, i32, i32, i32
  }
  func.func @transform_1(%arg0: i32) -> (i32, i32) {
    %c0_i32 = arith.constant 0 : i32
    %c0_i32_0 = arith.constant 0 : i32
    %c0_i32_1 = arith.constant 0 : i32
    return %c0_i32, %c0_i32_0 : i32, i32
  }
  func.func @transform_2(%arg0: i32) -> (i32, i32, i32) {
    %c0_i32 = arith.constant 0 : i32
    %c0_i32_0 = arith.constant 0 : i32
    %c0_i32_1 = arith.constant 0 : i32
    return %arg0, %c0_i32, %c0_i32_0 : i32, i32, i32
  }
}

</mosaic_0001>

<llo_original>
// kernel: tpu_custom_call.1
$region0: #{tpu_custom_call.1}
  #allocation0 [shape = 'u32[]', space=smem, size = 0x4, offset = 0x4, fixed_abs, tag = 'smem constant byte address 0x4 - core index']
  #allocation1 [shape = 'u32[144,128]{1,0:T(1,128)}', space=vmem, size = 0x12000, scoped, tag = 'internal scratch']
  %s0 = inlined_call_operand.vmem [shape: f32[2,16,16,4], index: 0, kind: input, shape index: {}]
  %s1 = inlined_call_operand.vmem [shape: f32[8,36], index: 1, kind: input, shape index: {}]
  %s2 = inlined_call_operand.hbm [shape: f32[2,8,196], index: 2, kind: output, shape index: {}]
  %s3 = sld [smem:[#allocation0]]
  $region41: #{tpu_custom_call.1} parent=0
    _
  %s5 = ssub.s32 1, %s3
  %s6 = scalar_select 0, %s5, %s3
  $region1: #{tpu_custom_call.1} parent=0
    #allocation2 [shape = 'u8[16384]{0}', space=vmem, size = 0x4000, scoped, tag = 'output window, operand 0']
    #allocation3 [shape = 's32[2]{0}', space=sflag, size = 0x8, scoped, tag = 'scoped memory for tpu_custom_call.1']
    %7 = vsyncpa [#allocation3], 0
    %s8 = scalar_lea.sflag [#allocation3], 1
    %9 = vsyncpa %s8, 0
    loop: start=0, step=1, limit=4
    $region2: #{tpu_custom_call.1} parent=1 // loop_pre_header
      _
    $region3: #{tpu_custom_call.1} parent=1 // loop_header
      %s11 = sphi 0, %s15
      %p12 = scmp.ge.s32.totalorder %s11, 4
      %s21 = sphi 0, %s23
      %s24 = sphi 0, %s21
      %s25 = sphi 0, %s24
      %s41 = sphi 0, %s25
      %s45 = sphi 0, %s45
      %s47 = sphi 0, %s45
      %s48 = sphi 0, %s47
      %s62 = sphi 0, %s48
      %s68 = sphi 0, %s70
      %s71 = sphi 0, %s68
      %s72 = sphi 0, %s71
      %s88 = sphi 0, %s72
    $region4: #{tpu_custom_call.1} parent=1 // loop_header_branch
      %14 = sbr.rel (%p12) target = $region8
    $region5: #{tpu_custom_call.1} parent=1 // loop_body
      %s16 = ssub.s32 %s11, 1
      %s17 = ssub.s32 %s11, 2
      %s18 = sadd.s32 %s11, 1
      %s19 = ssub.s32 %s11, %s18
      %p20 = scmp.eq.s32.totalorder %s19, 0
      %s22 = sadd.s32 %s21, 1
      %s23 = scalar_select %p20, %s21, %s22
      %p26 = pneg %p20
      %p27 = scmp.eq.s32.totalorder %s11, 1
      %p28 = por %p26, %p27
      %p29 = scmp.ne.s32.totalorder %s21, %s24
      %p30 = scmp.eq.s32.totalorder %s11, 0
      %p31 = por %p29, %p30
      %p32 = scmp.ne.s32.totalorder %s21, %s24
      %p33 = scmp.eq.s32.totalorder %s16, 1
      %p34 = por %p32, %p33
      %p35 = scmp.ne.s32.totalorder %s24, %s25
      %p36 = scmp.eq.s32.totalorder %s16, 0
      %p37 = por %p35, %p36
      %p38 = scmp.ne.s32.totalorder %s24, %s25
      %p39 = scmp.eq.s32.totalorder %s17, 1
      %p40 = por %p38, %p39
      %p42 = scmp.ne.s32.totalorder %s25, %s41
      %p43 = scmp.eq.s32.totalorder %s17, 0
      %p44 = por %p42, %p43
      %s46 = sadd.s32 %s45, 1
      %p49 = scmp.eq.s32.totalorder %s11, 1
      %p50 = scmp.ne.s32.totalorder %s45, %s47
      %p51 = scmp.eq.s32.totalorder %s11, 0
      %p52 = por %p50, %p51
      %p53 = scmp.ne.s32.totalorder %s45, %s47
      %p54 = scmp.eq.s32.totalorder %s16, 1
      %p55 = por %p53, %p54
      %p56 = scmp.ne.s32.totalorder %s47, %s48
      %p57 = scmp.eq.s32.totalorder %s16, 0
      %p58 = por %p56, %p57
      %p59 = scmp.ne.s32.totalorder %s47, %s48
      %p60 = scmp.eq.s32.totalorder %s17, 1
      %p61 = por %p59, %p60
      %p63 = scmp.ne.s32.totalorder %s48, %s62
      %p64 = scmp.eq.s32.totalorder %s17, 0
      %p65 = por %p63, %p64
      %s66 = ssub.s32 %s11, %s18
      %p67 = scmp.eq.s32.totalorder %s66, 0
      %s69 = sadd.s32 %s68, 1
      %s70 = scalar_select %p67, %s68, %s69
      %p73 = pneg %p67
      %p74 = scmp.eq.s32.totalorder %s11, 1
      %p75 = por %p73, %p74
      %p76 = scmp.ne.s32.totalorder %s68, %s71
      %p77 = scmp.eq.s32.totalorder %s11, 0
      %p78 = por %p76, %p77
      %p79 = scmp.ne.s32.totalorder %s68, %s71
      %p80 = scmp.eq.s32.totalorder %s16, 1
      %p81 = por %p79, %p80
      %p82 = scmp.ne.s32.totalorder %s71, %s72
      %p83 = scmp.eq.s32.totalorder %s16, 0
      %p84 = por %p82, %p83
      %p85 = scmp.ne.s32.totalorder %s71, %s72
      %p86 = scmp.eq.s32.totalorder %s17, 1
      %p87 = por %p85, %p86
      %p89 = scmp.ne.s32.totalorder %s72, %s88
      %p90 = scmp.eq.s32.totalorder %s17, 0
      %p91 = por %p89, %p90
      %p92 = scmp.le.s32.totalorder 1, %s11
      %p93 = scmp.lt.s32.totalorder %s11, 3
      %p94 = pnand %p92, %p93
      %p95 = pneg %p94
      // Predicated region
      $region9: #{tpu_custom_call.1} parent=5 // pred_check
        _
      $region10: #{tpu_custom_call.1} parent=5 // pred_check_branch
        %97 = sbr.rel (%p94) target = $region12
      $region11: #{tpu_custom_call.1} parent=5 // pred_region
        %s98 = ssub.s32 %s11, 1
        // Predicated region
        $region13: #{tpu_custom_call.1} parent=11 // pred_check
          %p99 = pneg %p58
        $region14: #{tpu_custom_call.1} parent=11 // pred_check_branch
          %101 = sbr.rel (%p99) target = $region16
        $region15: #{tpu_custom_call.1} parent=11 // pred_region
          _
        $region16: #{tpu_custom_call.1} parent=11 // pred_fallthru
          _
      $region12: #{tpu_custom_call.1} parent=5 // pred_fallthru
        _
      %p102 = scmp.lt.s32.totalorder %s11, 2
      // Predicated region
      $region17: #{tpu_custom_call.1} parent=5 // pred_check
        %p103 = pneg %p102
      $region18: #{tpu_custom_call.1} parent=5 // pred_check_branch
        %105 = sbr.rel (%p103) target = $region20
      $region19: #{tpu_custom_call.1} parent=5 // pred_region
        // Predicated region
        $region21: #{tpu_custom_call.1} parent=19 // pred_check
          %p106 = pneg %p31
        $region22: #{tpu_custom_call.1} parent=19 // pred_check_branch
          %108 = sbr.rel (%p106) target = $region24
        $region23: #{tpu_custom_call.1} parent=19 // pred_region
          %p109 = scmp.lt.s32.totalorder %s11, 1
          %s110 = scalar_select %p109, %s11, 1
          %s111 = smul.addr %s110, 32
          %s112 = smul.addr %s111, 8
          %s113 = scalar_lea.vmem %s0, %s112
        $region24: #{tpu_custom_call.1} parent=19 // pred_fallthru
          _
      $region20: #{tpu_custom_call.1} parent=5 // pred_fallthru
        _
      %p114 = scmp.le.s32.totalorder 1, %s11
      %p115 = scmp.lt.s32.totalorder %s11, 3
      %p116 = pnand %p114, %p115
      %p117 = pneg %p116
      // Predicated region
      $region25: #{tpu_custom_call.1} parent=5 // pred_check
        _
      $region26: #{tpu_custom_call.1} parent=5 // pred_check_branch
        %119 = sbr.rel (%p116) target = $region28
      $region27: #{tpu_custom_call.1} parent=5 // pred_region
        %s120 = ssub.s32 %s11, 1
        %p121 = scmp.lt.s32.totalorder %s16, 1
        %s122 = scalar_select %p121, %s16, 1
        %s123 = smul.addr %s122, 32
        %s124 = smul.addr %s123, 8
        %s125 = scalar_lea.vmem %s0, %s124
        %p126 = pneg %p37
        %p127 = pneg %p34
        %p128 = pneg %p58
        %p129 = pneg %p55
        %p130 = pneg %p84
        %p131 = pneg %p81
        %s132 = sand.u32 %s71, 1
        %s133 = scalar_lea.sflag [#allocation3], %s132
        %s134 = sand.u32 %s71, 1
        %s135 = smul.addr %s134, 16
        %s136 = scalar_lea.vmem [#allocation2], %s135
        %p137 = scmp.lt.s32.totalorder %s16, 1
        %s138 = scalar_select %p137, %s16, 1
        %s139 = smul.addr %s138, 32
        %s140 = smul.addr %s139, 8
        %s141 = scalar_lea.vmem %s0, %s140
        %v142 = vld [vmem:[%s141] sm:$0xff]
        %v143 = vld [vmem:[%s141 + $0x8] sm:$0x3f]
        %v144 = vld [vmem:[%s141 + $0x10] sm:$0xff]
        %v145 = vld [vmem:[%s141 + $0x18] sm:$0x3f]
        %v146 = vld [vmem:[%s141 + $0x20] sm:$0xff]
        %v147 = vld [vmem:[%s141 + $0x28] sm:$0x3f]
        %v148 = vld [vmem:[%s141 + $0x30] sm:$0xff]
        %v149 = vld [vmem:[%s141 + $0x38] sm:$0x3f]
        %v150 = vld [vmem:[%s141 + $0x40] sm:$0xff]
        %v151 = vld [vmem:[%s141 + $0x48] sm:$0x3f]
        %v152 = vld [vmem:[%s141 + $0x50] sm:$0xff]
        %v153 = vld [vmem:[%s141 + $0x58] sm:$0x3f]
        %v154 = vld [vmem:[%s141 + $0x60] sm:$0xff]
        %v155 = vld [vmem:[%s141 + $0x68] sm:$0x3f]
        %v156 = vld [vmem:[%s141 + $0x70] sm:$0xff]
        %v157 = vld [vmem:[%s141 + $0x78] sm:$0x3f]
        %v158 = vld [vmem:[%s141 + $0x80] sm:$0xff]
        %v159 = vld [vmem:[%s141 + $0x88] sm:$0x3f]
        %v160 = vld [vmem:[%s141 + $0x90] sm:$0xff]
        %v161 = vld [vmem:[%s141 + $0x98] sm:$0x3f]
        %v162 = vld [vmem:[%s141 + $0xa0] sm:$0xff]
        %v163 = vld [vmem:[%s141 + $0xa8] sm:$0x3f]
        %v164 = vld [vmem:[%s141 + $0xb0] sm:$0xff]
        %v165 = vld [vmem:[%s141 + $0xb8] sm:$0x3f]
        %v166 = vld [vmem:[%s141 + $0xc0] sm:$0xff]
        %v167 = vld [vmem:[%s141 + $0xc8] sm:$0x3f]
        %v168 = vld [vmem:[%s141 + $0xd0] sm:$0xff]
        %v169 = vld [vmem:[%s141 + $0xd8] sm:$0x3f]
        %v170 = vld [vmem:[%s141 + $0x1] sm:$0xff]
        %v171 = vld [vmem:[%s141 + $0x9] sm:$0x3f]
        %v172 = vld [vmem:[%s141 + $0x11] sm:$0xff]
        %v173 = vld [vmem:[%s141 + $0x19] sm:$0x3f]
        %v174 = vld [vmem:[%s141 + $0x21] sm:$0xff]
        %v175 = vld [vmem:[%s141 + $0x29] sm:$0x3f]
        %v176 = vld [vmem:[%s141 + $0x31] sm:$0xff]
        %v177 = vld [vmem:[%s141 + $0x39] sm:$0x3f]
        %v178 = vld [vmem:[%s141 + $0x41] sm:$0xff]
        %v179 = vld [vmem:[%s141 + $0x49] sm:$0x3f]
        %v180 = vld [vmem:[%s141 + $0x51] sm:$0xff]
        %v181 = vld [vmem:[%s141 + $0x59] sm:$0x3f]
        %v182 = vld [vmem:[%s141 + $0x61] sm:$0xff]
        %v183 = vld [vmem:[%s141 + $0x69] sm:$0x3f]
        %v184 = vld [vmem:[%s141 + $0x71] sm:$0xff]
        %v185 = vld [vmem:[%s141 + $0x79] sm:$0x3f]
        %v186 = vld [vmem:[%s141 + $0x81] sm:$0xff]
        %v187 = vld [vmem:[%s141 + $0x89] sm:$0x3f]
        %v188 = vld [vmem:[%s141 + $0x91] sm:$0xff]
        %v189 = vld [vmem:[%s141 + $0x99] sm:$0x3f]
        %v190 = vld [vmem:[%s141 + $0xa1] sm:$0xff]
        %v191 = vld [vmem:[%s141 + $0xa9] sm:$0x3f]
        %v192 = vld [vmem:[%s141 + $0xb1] sm:$0xff]
        %v193 = vld [vmem:[%s141 + $0xb9] sm:$0x3f]
        %v194 = vld [vmem:[%s141 + $0xc1] sm:$0xff]
        %v195 = vld [vmem:[%s141 + $0xc9] sm:$0x3f]
        %v196 = vld [vmem:[%s141 + $0xd1] sm:$0xff]
        %v197 = vld [vmem:[%s141 + $0xd9] sm:$0x3f]
        %v198 = vld [vmem:[%s141 + $0x2] sm:$0xff]
        %v199 = vld [vmem:[%s141 + $0xa] sm:$0x3f]
        %v200 = vld [vmem:[%s141 + $0x12] sm:$0xff]
        %v201 = vld [vmem:[%s141 + $0x1a] sm:$0x3f]
        %v202 = vld [vmem:[%s141 + $0x22] sm:$0xff]
        %v203 = vld [vmem:[%s141 + $0x2a] sm:$0x3f]
        %v204 = vld [vmem:[%s141 + $0x32] sm:$0xff]
        %v205 = vld [vmem:[%s141 + $0x3a] sm:$0x3f]
        %v206 = vld [vmem:[%s141 + $0x42] sm:$0xff]
        %v207 = vld [vmem:[%s141 + $0x4a] sm:$0x3f]
        %v208 = vld [vmem:[%s141 + $0x52] sm:$0xff]
        %v209 = vld [vmem:[%s141 + $0x5a] sm:$0x3f]
        %v210 = vld [vmem:[%s141 + $0x62] sm:$0xff]
        %v211 = vld [vmem:[%s141 + $0x6a] sm:$0x3f]
        %v212 = vld [vmem:[%s141 + $0x72] sm:$0xff]
        %v213 = vld [vmem:[%s141 + $0x7a] sm:$0x3f]
        %v214 = vld [vmem:[%s141 + $0x82] sm:$0xff]
        %v215 = vld [vmem:[%s141 + $0x8a] sm:$0x3f]
        %v216 = vld [vmem:[%s141 + $0x92] sm:$0xff]
        %v217 = vld [vmem:[%s141 + $0x9a] sm:$0x3f]
        %v218 = vld [vmem:[%s141 + $0xa2] sm:$0xff]
        %v219 = vld [vmem:[%s141 + $0xaa] sm:$0x3f]
        %v220 = vld [vmem:[%s141 + $0xb2] sm:$0xff]
        %v221 = vld [vmem:[%s141 + $0xba] sm:$0x3f]
        %v222 = vld [vmem:[%s141 + $0xc2] sm:$0xff]
        %v223 = vld [vmem:[%s141 + $0xca] sm:$0x3f]
        %v224 = vld [vmem:[%s141 + $0xd2] sm:$0xff]
        %v225 = vld [vmem:[%s141 + $0xda] sm:$0x3f]
        %s226 = scalar_lea.vmem %s141, 16
        %v227 = vld [vmem:[%s226] sm:$0xff]
        %v228 = vld [vmem:[%s226 + $0x8] sm:$0x3f]
        %v229 = vld [vmem:[%s226 + $0x10] sm:$0xff]
        %v230 = vld [vmem:[%s226 + $0x18] sm:$0x3f]
        %v231 = vld [vmem:[%s226 + $0x20] sm:$0xff]
        %v232 = vld [vmem:[%s226 + $0x28] sm:$0x3f]
        %v233 = vld [vmem:[%s226 + $0x30] sm:$0xff]
        %v234 = vld [vmem:[%s226 + $0x38] sm:$0x3f]
        %v235 = vld [vmem:[%s226 + $0x40] sm:$0xff]
        %v236 = vld [vmem:[%s226 + $0x48] sm:$0x3f]
        %v237 = vld [vmem:[%s226 + $0x50] sm:$0xff]
        %v238 = vld [vmem:[%s226 + $0x58] sm:$0x3f]
        %v239 = vld [vmem:[%s226 + $0x60] sm:$0xff]
        %v240 = vld [vmem:[%s226 + $0x68] sm:$0x3f]
        %v241 = vld [vmem:[%s226 + $0x70] sm:$0xff]
        %v242 = vld [vmem:[%s226 + $0x78] sm:$0x3f]
        %v243 = vld [vmem:[%s226 + $0x80] sm:$0xff]
        %v244 = vld [vmem:[%s226 + $0x88] sm:$0x3f]
        %v245 = vld [vmem:[%s226 + $0x90] sm:$0xff]
        %v246 = vld [vmem:[%s226 + $0x98] sm:$0x3f]
        %v247 = vld [vmem:[%s226 + $0xa0] sm:$0xff]
        %v248 = vld [vmem:[%s226 + $0xa8] sm:$0x3f]
        %v249 = vld [vmem:[%s226 + $0xb0] sm:$0xff]
        %v250 = vld [vmem:[%s226 + $0xb8] sm:$0x3f]
        %v251 = vld [vmem:[%s226 + $0xc0] sm:$0xff]
        %v252 = vld [vmem:[%s226 + $0xc8] sm:$0x3f]
        %v253 = vld [vmem:[%s226 + $0xd0] sm:$0xff]
        %v254 = vld [vmem:[%s226 + $0xd8] sm:$0x3f]
        %v255 = vld [vmem:[%s226 + $0x1] sm:$0xff]
        %v256 = vld [vmem:[%s226 + $0x9] sm:$0x3f]
        %v257 = vld [vmem:[%s226 + $0x11] sm:$0xff]
        %v258 = vld [vmem:[%s226 + $0x19] sm:$0x3f]
        %v259 = vld [vmem:[%s226 + $0x21] sm:$0xff]
        %v260 = vld [vmem:[%s226 + $0x29] sm:$0x3f]
        %v261 = vld [vmem:[%s226 + $0x31] sm:$0xff]
        %v262 = vld [vmem:[%s226 + $0x39] sm:$0x3f]
        %v263 = vld [vmem:[%s226 + $0x41] sm:$0xff]
        %v264 = vld [vmem:[%s226 + $0x49] sm:$0x3f]
        %v265 = vld [vmem:[%s226 + $0x51] sm:$0xff]
        %v266 = vld [vmem:[%s226 + $0x59] sm:$0x3f]
        %v267 = vld [vmem:[%s226 + $0x61] sm:$0xff]
        %v268 = vld [vmem:[%s226 + $0x69] sm:$0x3f]
        %v269 = vld [vmem:[%s226 + $0x71] sm:$0xff]
        %v270 = vld [vmem:[%s226 + $0x79] sm:$0x3f]
        %v271 = vld [vmem:[%s226 + $0x81] sm:$0xff]
        %v272 = vld [vmem:[%s226 + $0x89] sm:$0x3f]
        %v273 = vld [vmem:[%s226 + $0x91] sm:$0xff]
        %v274 = vld [vmem:[%s226 + $0x99] sm:$0x3f]
        %v275 = vld [vmem:[%s226 + $0xa1] sm:$0xff]
        %v276 = vld [vmem:[%s226 + $0xa9] sm:$0x3f]
        %v277 = vld [vmem:[%s226 + $0xb1] sm:$0xff]
        %v278 = vld [vmem:[%s226 + $0xb9] sm:$0x3f]
        %v279 = vld [vmem:[%s226 + $0xc1] sm:$0xff]
        %v280 = vld [vmem:[%s226 + $0xc9] sm:$0x3f]
        %v281 = vld [vmem:[%s226 + $0xd1] sm:$0xff]
        %v282 = vld [vmem:[%s226 + $0xd9] sm:$0x3f]
        %v283 = vld [vmem:[%s226 + $0x2] sm:$0xff]
        %v284 = vld [vmem:[%s226 + $0xa] sm:$0x3f]
        %v285 = vld [vmem:[%s226 + $0x12] sm:$0xff]
        %v286 = vld [vmem:[%s226 + $0x1a] sm:$0x3f]
        %v287 = vld [vmem:[%s226 + $0x22] sm:$0xff]
        %v288 = vld [vmem:[%s226 + $0x2a] sm:$0x3f]
        %v289 = vld [vmem:[%s226 + $0x32] sm:$0xff]
        %v290 = vld [vmem:[%s226 + $0x3a] sm:$0x3f]
        %v291 = vld [vmem:[%s226 + $0x42] sm:$0xff]
        %v292 = vld [vmem:[%s226 + $0x4a] sm:$0x3f]
        %v293 = vld [vmem:[%s226 + $0x52] sm:$0xff]
        %v294 = vld [vmem:[%s226 + $0x5a] sm:$0x3f]
        %v295 = vld [vmem:[%s226 + $0x62] sm:$0xff]
        %v296 = vld [vmem:[%s226 + $0x6a] sm:$0x3f]
        %v297 = vld [vmem:[%s226 + $0x72] sm:$0xff]
        %v298 = vld [vmem:[%s226 + $0x7a] sm:$0x3f]
        %v299 = vld [vmem:[%s226 + $0x82] sm:$0xff]
        %v300 = vld [vmem:[%s226 + $0x8a] sm:$0x3f]
        %v301 = vld [vmem:[%s226 + $0x92] sm:$0xff]
        %v302 = vld [vmem:[%s226 + $0x9a] sm:$0x3f]
        %v303 = vld [vmem:[%s226 + $0xa2] sm:$0xff]
        %v304 = vld [vmem:[%s226 + $0xaa] sm:$0x3f]
        %v305 = vld [vmem:[%s226 + $0xb2] sm:$0xff]
        %v306 = vld [vmem:[%s226 + $0xba] sm:$0x3f]
        %v307 = vld [vmem:[%s226 + $0xc2] sm:$0xff]
        %v308 = vld [vmem:[%s226 + $0xca] sm:$0x3f]
        %v309 = vld [vmem:[%s226 + $0xd2] sm:$0xff]
        %v310 = vld [vmem:[%s226 + $0xda] sm:$0x3f]
        %s311 = scalar_lea.vmem %s141, 32
        %v312 = vld [vmem:[%s311] sm:$0xff]
        %v313 = vld [vmem:[%s311 + $0x8] sm:$0x3f]
        %v314 = vld [vmem:[%s311 + $0x10] sm:$0xff]
        %v315 = vld [vmem:[%s311 + $0x18] sm:$0x3f]
        %v316 = vld [vmem:[%s311 + $0x20] sm:$0xff]
        %v317 = vld [vmem:[%s311 + $0x28] sm:$0x3f]
        %v318 = vld [vmem:[%s311 + $0x30] sm:$0xff]
        %v319 = vld [vmem:[%s311 + $0x38] sm:$0x3f]
        %v320 = vld [vmem:[%s311 + $0x40] sm:$0xff]
        %v321 = vld [vmem:[%s311 + $0x48] sm:$0x3f]
        %v322 = vld [vmem:[%s311 + $0x50] sm:$0xff]
        %v323 = vld [vmem:[%s311 + $0x58] sm:$0x3f]
        %v324 = vld [vmem:[%s311 + $0x60] sm:$0xff]
        %v325 = vld [vmem:[%s311 + $0x68] sm:$0x3f]
        %v326 = vld [vmem:[%s311 + $0x70] sm:$0xff]
        %v327 = vld [vmem:[%s311 + $0x78] sm:$0x3f]
        %v328 = vld [vmem:[%s311 + $0x80] sm:$0xff]
        %v329 = vld [vmem:[%s311 + $0x88] sm:$0x3f]
        %v330 = vld [vmem:[%s311 + $0x90] sm:$0xff]
        %v331 = vld [vmem:[%s311 + $0x98] sm:$0x3f]
        %v332 = vld [vmem:[%s311 + $0xa0] sm:$0xff]
        %v333 = vld [vmem:[%s311 + $0xa8] sm:$0x3f]
        %v334 = vld [vmem:[%s311 + $0xb0] sm:$0xff]
        %v335 = vld [vmem:[%s311 + $0xb8] sm:$0x3f]
        %v336 = vld [vmem:[%s311 + $0xc0] sm:$0xff]
        %v337 = vld [vmem:[%s311 + $0xc8] sm:$0x3f]
        %v338 = vld [vmem:[%s311 + $0xd0] sm:$0xff]
        %v339 = vld [vmem:[%s311 + $0xd8] sm:$0x3f]
        %v340 = vld [vmem:[%s311 + $0x1] sm:$0xff]
        %v341 = vld [vmem:[%s311 + $0x9] sm:$0x3f]
        %v342 = vld [vmem:[%s311 + $0x11] sm:$0xff]
        %v343 = vld [vmem:[%s311 + $0x19] sm:$0x3f]
        %v344 = vld [vmem:[%s311 + $0x21] sm:$0xff]
        %v345 = vld [vmem:[%s311 + $0x29] sm:$0x3f]
        %v346 = vld [vmem:[%s311 + $0x31] sm:$0xff]
        %v347 = vld [vmem:[%s311 + $0x39] sm:$0x3f]
        %v348 = vld [vmem:[%s311 + $0x41] sm:$0xff]
        %v349 = vld [vmem:[%s311 + $0x49] sm:$0x3f]
        %v350 = vld [vmem:[%s311 + $0x51] sm:$0xff]
        %v351 = vld [vmem:[%s311 + $0x59] sm:$0x3f]
        %v352 = vld [vmem:[%s311 + $0x61] sm:$0xff]
        %v353 = vld [vmem:[%s311 + $0x69] sm:$0x3f]
        %v354 = vld [vmem:[%s311 + $0x71] sm:$0xff]
        %v355 = vld [vmem:[%s311 + $0x79] sm:$0x3f]
        %v356 = vld [vmem:[%s311 + $0x81] sm:$0xff]
        %v357 = vld [vmem:[%s311 + $0x89] sm:$0x3f]
        %v358 = vld [vmem:[%s311 + $0x91] sm:$0xff]
        %v359 = vld [vmem:[%s311 + $0x99] sm:$0x3f]
        %v360 = vld [vmem:[%s311 + $0xa1] sm:$0xff]
        %v361 = vld [vmem:[%s311 + $0xa9] sm:$0x3f]
        %v362 = vld [vmem:[%s311 + $0xb1] sm:$0xff]
        %v363 = vld [vmem:[%s311 + $0xb9] sm:$0x3f]
        %v364 = vld [vmem:[%s311 + $0xc1] sm:$0xff]
        %v365 = vld [vmem:[%s311 + $0xc9] sm:$0x3f]
        %v366 = vld [vmem:[%s311 + $0xd1] sm:$0xff]
        %v367 = vld [vmem:[%s311 + $0xd9] sm:$0x3f]
        %v368 = vld [vmem:[%s311 + $0x2] sm:$0xff]
        %v369 = vld [vmem:[%s311 + $0xa] sm:$0x3f]
        %v370 = vld [vmem:[%s311 + $0x12] sm:$0xff]
        %v371 = vld [vmem:[%s311 + $0x1a] sm:$0x3f]
        %v372 = vld [vmem:[%s311 + $0x22] sm:$0xff]
        %v373 = vld [vmem:[%s311 + $0x2a] sm:$0x3f]
        %v374 = vld [vmem:[%s311 + $0x32] sm:$0xff]
        %v375 = vld [vmem:[%s311 + $0x3a] sm:$0x3f]
        %v376 = vld [vmem:[%s311 + $0x42] sm:$0xff]
        %v377 = vld [vmem:[%s311 + $0x4a] sm:$0x3f]
        %v378 = vld [vmem:[%s311 + $0x52] sm:$0xff]
        %v379 = vld [vmem:[%s311 + $0x5a] sm:$0x3f]
        %v380 = vld [vmem:[%s311 + $0x62] sm:$0xff]
        %v381 = vld [vmem:[%s311 + $0x6a] sm:$0x3f]
        %v382 = vld [vmem:[%s311 + $0x72] sm:$0xff]
        %v383 = vld [vmem:[%s311 + $0x7a] sm:$0x3f]
        %v384 = vld [vmem:[%s311 + $0x82] sm:$0xff]
        %v385 = vld [vmem:[%s311 + $0x8a] sm:$0x3f]
        %v386 = vld [vmem:[%s311 + $0x92] sm:$0xff]
        %v387 = vld [vmem:[%s311 + $0x9a] sm:$0x3f]
        %v388 = vld [vmem:[%s311 + $0xa2] sm:$0xff]
        %v389 = vld [vmem:[%s311 + $0xaa] sm:$0x3f]
        %v390 = vld [vmem:[%s311 + $0xb2] sm:$0xff]
        %v391 = vld [vmem:[%s311 + $0xba] sm:$0x3f]
        %v392 = vld [vmem:[%s311 + $0xc2] sm:$0xff]
        %v393 = vld [vmem:[%s311 + $0xca] sm:$0x3f]
        %v394 = vld [vmem:[%s311 + $0xd2] sm:$0xff]
        %v395 = vld [vmem:[%s311 + $0xda] sm:$0x3f]
        %424 = vrot.lane.b32.xlu0 %v170, 4
        %v425 = vpop.permute.xlu0 %424
        %426 = vrot.lane.b32.xlu0 %v171, 4
        %v427 = vpop.permute.xlu0 %426
        %428 = vrot.lane.b32.xlu0 %v172, 4
        %v429 = vpop.permute.xlu0 %428
        %430 = vrot.lane.b32.xlu0 %v173, 4
        %v431 = vpop.permute.xlu0 %430
        %432 = vrot.lane.b32.xlu0 %v174, 4
        %v433 = vpop.permute.xlu0 %432
        %434 = vrot.lane.b32.xlu0 %v175, 4
        %v435 = vpop.permute.xlu0 %434
        %436 = vrot.lane.b32.xlu0 %v176, 4
        %v437 = vpop.permute.xlu0 %436
        %438 = vrot.lane.b32.xlu0 %v177, 4
        %v439 = vpop.permute.xlu0 %438
        %440 = vrot.lane.b32.xlu0 %v178, 4
        %v441 = vpop.permute.xlu0 %440
        %442 = vrot.lane.b32.xlu0 %v179, 4
        %v443 = vpop.permute.xlu0 %442
        %444 = vrot.lane.b32.xlu0 %v180, 4
        %v445 = vpop.permute.xlu0 %444
        %446 = vrot.lane.b32.xlu0 %v181, 4
        %v447 = vpop.permute.xlu0 %446
        %448 = vrot.lane.b32.xlu0 %v182, 4
        %v449 = vpop.permute.xlu0 %448
        %450 = vrot.lane.b32.xlu0 %v183, 4
        %v451 = vpop.permute.xlu0 %450
        %452 = vrot.lane.b32.xlu0 %v184, 4
        %v453 = vpop.permute.xlu0 %452
        %454 = vrot.lane.b32.xlu0 %v185, 4
        %v455 = vpop.permute.xlu0 %454
        %456 = vrot.lane.b32.xlu0 %v186, 4
        %v457 = vpop.permute.xlu0 %456
        %458 = vrot.lane.b32.xlu0 %v187, 4
        %v459 = vpop.permute.xlu0 %458
        %460 = vrot.lane.b32.xlu0 %v188, 4
        %v461 = vpop.permute.xlu0 %460
        %462 = vrot.lane.b32.xlu0 %v189, 4
        %v463 = vpop.permute.xlu0 %462
        %464 = vrot.lane.b32.xlu0 %v190, 4
        %v465 = vpop.permute.xlu0 %464
        %466 = vrot.lane.b32.xlu0 %v191, 4
        %v467 = vpop.permute.xlu0 %466
        %468 = vrot.lane.b32.xlu0 %v192, 4
        %v469 = vpop.permute.xlu0 %468
        %470 = vrot.lane.b32.xlu0 %v193, 4
        %v471 = vpop.permute.xlu0 %470
        %472 = vrot.lane.b32.xlu0 %v194, 4
        %v473 = vpop.permute.xlu0 %472
        %474 = vrot.lane.b32.xlu0 %v195, 4
        %v475 = vpop.permute.xlu0 %474
        %476 = vrot.lane.b32.xlu0 %v196, 4
        %v477 = vpop.permute.xlu0 %476
        %478 = vrot.lane.b32.xlu0 %v197, 4
        %v479 = vpop.permute.xlu0 %478
        %536 = vrot.lane.b32.xlu0 %v198, 8
        %v537 = vpop.permute.xlu0 %536
        %538 = vrot.lane.b32.xlu0 %v199, 8
        %v539 = vpop.permute.xlu0 %538
        %540 = vrot.lane.b32.xlu0 %v200, 8
        %v541 = vpop.permute.xlu0 %540
        %542 = vrot.lane.b32.xlu0 %v201, 8
        %v543 = vpop.permute.xlu0 %542
        %544 = vrot.lane.b32.xlu0 %v202, 8
        %v545 = vpop.permute.xlu0 %544
        %546 = vrot.lane.b32.xlu0 %v203, 8
        %v547 = vpop.permute.xlu0 %546
        %548 = vrot.lane.b32.xlu0 %v204, 8
        %v549 = vpop.permute.xlu0 %548
        %550 = vrot.lane.b32.xlu0 %v205, 8
        %v551 = vpop.permute.xlu0 %550
        %552 = vrot.lane.b32.xlu0 %v206, 8
        %v553 = vpop.permute.xlu0 %552
        %554 = vrot.lane.b32.xlu0 %v207, 8
        %v555 = vpop.permute.xlu0 %554
        %556 = vrot.lane.b32.xlu0 %v208, 8
        %v557 = vpop.permute.xlu0 %556
        %558 = vrot.lane.b32.xlu0 %v209, 8
        %v559 = vpop.permute.xlu0 %558
        %560 = vrot.lane.b32.xlu0 %v210, 8
        %v561 = vpop.permute.xlu0 %560
        %562 = vrot.lane.b32.xlu0 %v211, 8
        %v563 = vpop.permute.xlu0 %562
        %564 = vrot.lane.b32.xlu0 %v212, 8
        %v565 = vpop.permute.xlu0 %564
        %566 = vrot.lane.b32.xlu0 %v213, 8
        %v567 = vpop.permute.xlu0 %566
        %568 = vrot.lane.b32.xlu0 %v214, 8
        %v569 = vpop.permute.xlu0 %568
        %570 = vrot.lane.b32.xlu0 %v215, 8
        %v571 = vpop.permute.xlu0 %570
        %572 = vrot.lane.b32.xlu0 %v216, 8
        %v573 = vpop.permute.xlu0 %572
        %574 = vrot.lane.b32.xlu0 %v217, 8
        %v575 = vpop.permute.xlu0 %574
        %576 = vrot.lane.b32.xlu0 %v218, 8
        %v577 = vpop.permute.xlu0 %576
        %578 = vrot.lane.b32.xlu0 %v219, 8
        %v579 = vpop.permute.xlu0 %578
        %580 = vrot.lane.b32.xlu0 %v220, 8
        %v581 = vpop.permute.xlu0 %580
        %582 = vrot.lane.b32.xlu0 %v221, 8
        %v583 = vpop.permute.xlu0 %582
        %584 = vrot.lane.b32.xlu0 %v222, 8
        %v585 = vpop.permute.xlu0 %584
        %586 = vrot.lane.b32.xlu0 %v223, 8
        %v587 = vpop.permute.xlu0 %586
        %588 = vrot.lane.b32.xlu0 %v224, 8
        %v589 = vpop.permute.xlu0 %588
        %590 = vrot.lane.b32.xlu0 %v225, 8
        %v591 = vpop.permute.xlu0 %590
        %648 = vrot.lane.b32.xlu0 %v227, 12
        %v649 = vpop.permute.xlu0 %648
        %650 = vrot.lane.b32.xlu0 %v228, 12
        %v651 = vpop.permute.xlu0 %650
        %652 = vrot.lane.b32.xlu0 %v229, 12
        %v653 = vpop.permute.xlu0 %652
        %654 = vrot.lane.b32.xlu0 %v230, 12
        %v655 = vpop.permute.xlu0 %654
        %656 = vrot.lane.b32.xlu0 %v231, 12
        %v657 = vpop.permute.xlu0 %656
        %658 = vrot.lane.b32.xlu0 %v232, 12
        %v659 = vpop.permute.xlu0 %658
        %660 = vrot.lane.b32.xlu0 %v233, 12
        %v661 = vpop.permute.xlu0 %660
        %662 = vrot.lane.b32.xlu0 %v234, 12
        %v663 = vpop.permute.xlu0 %662
        %664 = vrot.lane.b32.xlu0 %v235, 12
        %v665 = vpop.permute.xlu0 %664
        %666 = vrot.lane.b32.xlu0 %v236, 12
        %v667 = vpop.permute.xlu0 %666
        %668 = vrot.lane.b32.xlu0 %v237, 12
        %v669 = vpop.permute.xlu0 %668
        %670 = vrot.lane.b32.xlu0 %v238, 12
        %v671 = vpop.permute.xlu0 %670
        %672 = vrot.lane.b32.xlu0 %v239, 12
        %v673 = vpop.permute.xlu0 %672
        %674 = vrot.lane.b32.xlu0 %v240, 12
        %v675 = vpop.permute.xlu0 %674
        %676 = vrot.lane.b32.xlu0 %v241, 12
        %v677 = vpop.permute.xlu0 %676
        %678 = vrot.lane.b32.xlu0 %v242, 12
        %v679 = vpop.permute.xlu0 %678
        %680 = vrot.lane.b32.xlu0 %v243, 12
        %v681 = vpop.permute.xlu0 %680
        %682 = vrot.lane.b32.xlu0 %v244, 12
        %v683 = vpop.permute.xlu0 %682
        %684 = vrot.lane.b32.xlu0 %v245, 12
        %v685 = vpop.permute.xlu0 %684
        %686 = vrot.lane.b32.xlu0 %v246, 12
        %v687 = vpop.permute.xlu0 %686
        %688 = vrot.lane.b32.xlu0 %v247, 12
        %v689 = vpop.permute.xlu0 %688
        %690 = vrot.lane.b32.xlu0 %v248, 12
        %v691 = vpop.permute.xlu0 %690
        %692 = vrot.lane.b32.xlu0 %v249, 12
        %v693 = vpop.permute.xlu0 %692
        %694 = vrot.lane.b32.xlu0 %v250, 12
        %v695 = vpop.permute.xlu0 %694
        %696 = vrot.lane.b32.xlu0 %v251, 12
        %v697 = vpop.permute.xlu0 %696
        %698 = vrot.lane.b32.xlu0 %v252, 12
        %v699 = vpop.permute.xlu0 %698
        %700 = vrot.lane.b32.xlu0 %v253, 12
        %v701 = vpop.permute.xlu0 %700
        %702 = vrot.lane.b32.xlu0 %v254, 12
        %v703 = vpop.permute.xlu0 %702
        %760 = vrot.lane.b32.xlu0 %v255, 16
        %v761 = vpop.permute.xlu0 %760
        %762 = vrot.lane.b32.xlu0 %v256, 16
        %v763 = vpop.permute.xlu0 %762
        %764 = vrot.lane.b32.xlu0 %v257, 16
        %v765 = vpop.permute.xlu0 %764
        %766 = vrot.lane.b32.xlu0 %v258, 16
        %v767 = vpop.permute.xlu0 %766
        %768 = vrot.lane.b32.xlu0 %v259, 16
        %v769 = vpop.permute.xlu0 %768
        %770 = vrot.lane.b32.xlu0 %v260, 16
        %v771 = vpop.permute.xlu0 %770
        %772 = vrot.lane.b32.xlu0 %v261, 16
        %v773 = vpop.permute.xlu0 %772
        %774 = vrot.lane.b32.xlu0 %v262, 16
        %v775 = vpop.permute.xlu0 %774
        %776 = vrot.lane.b32.xlu0 %v263, 16
        %v777 = vpop.permute.xlu0 %776
        %778 = vrot.lane.b32.xlu0 %v264, 16
        %v779 = vpop.permute.xlu0 %778
        %780 = vrot.lane.b32.xlu0 %v265, 16
        %v781 = vpop.permute.xlu0 %780
        %782 = vrot.lane.b32.xlu0 %v266, 16
        %v783 = vpop.permute.xlu0 %782
        %784 = vrot.lane.b32.xlu0 %v267, 16
        %v785 = vpop.permute.xlu0 %784
        %786 = vrot.lane.b32.xlu0 %v268, 16
        %v787 = vpop.permute.xlu0 %786
        %788 = vrot.lane.b32.xlu0 %v269, 16
        %v789 = vpop.permute.xlu0 %788
        %790 = vrot.lane.b32.xlu0 %v270, 16
        %v791 = vpop.permute.xlu0 %790
        %792 = vrot.lane.b32.xlu0 %v271, 16
        %v793 = vpop.permute.xlu0 %792
        %794 = vrot.lane.b32.xlu0 %v272, 16
        %v795 = vpop.permute.xlu0 %794
        %796 = vrot.lane.b32.xlu0 %v273, 16
        %v797 = vpop.permute.xlu0 %796
        %798 = vrot.lane.b32.xlu0 %v274, 16
        %v799 = vpop.permute.xlu0 %798
        %800 = vrot.lane.b32.xlu0 %v275, 16
        %v801 = vpop.permute.xlu0 %800
        %802 = vrot.lane.b32.xlu0 %v276, 16
        %v803 = vpop.permute.xlu0 %802
        %804 = vrot.lane.b32.xlu0 %v277, 16
        %v805 = vpop.permute.xlu0 %804
        %806 = vrot.lane.b32.xlu0 %v278, 16
        %v807 = vpop.permute.xlu0 %806
        %808 = vrot.lane.b32.xlu0 %v279, 16
        %v809 = vpop.permute.xlu0 %808
        %810 = vrot.lane.b32.xlu0 %v280, 16
        %v811 = vpop.permute.xlu0 %810
        %812 = vrot.lane.b32.xlu0 %v281, 16
        %v813 = vpop.permute.xlu0 %812
        %814 = vrot.lane.b32.xlu0 %v282, 16
        %v815 = vpop.permute.xlu0 %814
        %872 = vrot.lane.b32.xlu0 %v283, 20
        %v873 = vpop.permute.xlu0 %872
        %874 = vrot.lane.b32.xlu0 %v284, 20
        %v875 = vpop.permute.xlu0 %874
        %876 = vrot.lane.b32.xlu0 %v285, 20
        %v877 = vpop.permute.xlu0 %876
        %878 = vrot.lane.b32.xlu0 %v286, 20
        %v879 = vpop.permute.xlu0 %878
        %880 = vrot.lane.b32.xlu0 %v287, 20
        %v881 = vpop.permute.xlu0 %880
        %882 = vrot.lane.b32.xlu0 %v288, 20
        %v883 = vpop.permute.xlu0 %882
        %884 = vrot.lane.b32.xlu0 %v289, 20
        %v885 = vpop.permute.xlu0 %884
        %886 = vrot.lane.b32.xlu0 %v290, 20
        %v887 = vpop.permute.xlu0 %886
        %888 = vrot.lane.b32.xlu0 %v291, 20
        %v889 = vpop.permute.xlu0 %888
        %890 = vrot.lane.b32.xlu0 %v292, 20
        %v891 = vpop.permute.xlu0 %890
        %892 = vrot.lane.b32.xlu0 %v293, 20
        %v893 = vpop.permute.xlu0 %892
        %894 = vrot.lane.b32.xlu0 %v294, 20
        %v895 = vpop.permute.xlu0 %894
        %896 = vrot.lane.b32.xlu0 %v295, 20
        %v897 = vpop.permute.xlu0 %896
        %898 = vrot.lane.b32.xlu0 %v296, 20
        %v899 = vpop.permute.xlu0 %898
        %900 = vrot.lane.b32.xlu0 %v297, 20
        %v901 = vpop.permute.xlu0 %900
        %902 = vrot.lane.b32.xlu0 %v298, 20
        %v903 = vpop.permute.xlu0 %902
        %904 = vrot.lane.b32.xlu0 %v299, 20
        %v905 = vpop.permute.xlu0 %904
        %906 = vrot.lane.b32.xlu0 %v300, 20
        %v907 = vpop.permute.xlu0 %906
        %908 = vrot.lane.b32.xlu0 %v301, 20
        %v909 = vpop.permute.xlu0 %908
        %910 = vrot.lane.b32.xlu0 %v302, 20
        %v911 = vpop.permute.xlu0 %910
        %912 = vrot.lane.b32.xlu0 %v303, 20
        %v913 = vpop.permute.xlu0 %912
        %914 = vrot.lane.b32.xlu0 %v304, 20
        %v915 = vpop.permute.xlu0 %914
        %916 = vrot.lane.b32.xlu0 %v305, 20
        %v917 = vpop.permute.xlu0 %916
        %918 = vrot.lane.b32.xlu0 %v306, 20
        %v919 = vpop.permute.xlu0 %918
        %920 = vrot.lane.b32.xlu0 %v307, 20
        %v921 = vpop.permute.xlu0 %920
        %922 = vrot.lane.b32.xlu0 %v308, 20
        %v923 = vpop.permute.xlu0 %922
        %924 = vrot.lane.b32.xlu0 %v309, 20
        %v925 = vpop.permute.xlu0 %924
        %926 = vrot.lane.b32.xlu0 %v310, 20
        %v927 = vpop.permute.xlu0 %926
        %984 = vrot.lane.b32.xlu0 %v312, 24
        %v985 = vpop.permute.xlu0 %984
        %986 = vrot.lane.b32.xlu0 %v313, 24
        %v987 = vpop.permute.xlu0 %986
        %988 = vrot.lane.b32.xlu0 %v314, 24
        %v989 = vpop.permute.xlu0 %988
        %990 = vrot.lane.b32.xlu0 %v315, 24
        %v991 = vpop.permute.xlu0 %990
        %992 = vrot.lane.b32.xlu0 %v316, 24
        %v993 = vpop.permute.xlu0 %992
        %994 = vrot.lane.b32.xlu0 %v317, 24
        %v995 = vpop.permute.xlu0 %994
        %996 = vrot.lane.b32.xlu0 %v318, 24
        %v997 = vpop.permute.xlu0 %996
        %998 = vrot.lane.b32.xlu0 %v319, 24
        %v999 = vpop.permute.xlu0 %998
        %1000 = vrot.lane.b32.xlu0 %v320, 24
        %v1001 = vpop.permute.xlu0 %1000
        %1002 = vrot.lane.b32.xlu0 %v321, 24
        %v1003 = vpop.permute.xlu0 %1002
        %1004 = vrot.lane.b32.xlu0 %v322, 24
        %v1005 = vpop.permute.xlu0 %1004
        %1006 = vrot.lane.b32.xlu0 %v323, 24
        %v1007 = vpop.permute.xlu0 %1006
        %1008 = vrot.lane.b32.xlu0 %v324, 24
        %v1009 = vpop.permute.xlu0 %1008
        %1010 = vrot.lane.b32.xlu0 %v325, 24
        %v1011 = vpop.permute.xlu0 %1010
        %1012 = vrot.lane.b32.xlu0 %v326, 24
        %v1013 = vpop.permute.xlu0 %1012
        %1014 = vrot.lane.b32.xlu0 %v327, 24
        %v1015 = vpop.permute.xlu0 %1014
        %1016 = vrot.lane.b32.xlu0 %v328, 24
        %v1017 = vpop.permute.xlu0 %1016
        %1018 = vrot.lane.b32.xlu0 %v329, 24
        %v1019 = vpop.permute.xlu0 %1018
        %1020 = vrot.lane.b32.xlu0 %v330, 24
        %v1021 = vpop.permute.xlu0 %1020
        %1022 = vrot.lane.b32.xlu0 %v331, 24
        %v1023 = vpop.permute.xlu0 %1022
        %1024 = vrot.lane.b32.xlu0 %v332, 24
        %v1025 = vpop.permute.xlu0 %1024
        %1026 = vrot.lane.b32.xlu0 %v333, 24
        %v1027 = vpop.permute.xlu0 %1026
        %1028 = vrot.lane.b32.xlu0 %v334, 24
        %v1029 = vpop.permute.xlu0 %1028
        %1030 = vrot.lane.b32.xlu0 %v335, 24
        %v1031 = vpop.permute.xlu0 %1030
        %1032 = vrot.lane.b32.xlu0 %v336, 24
        %v1033 = vpop.permute.xlu0 %1032
        %1034 = vrot.lane.b32.xlu0 %v337, 24
        %v1035 = vpop.permute.xlu0 %1034
        %1036 = vrot.lane.b32.xlu0 %v338, 24
        %v1037 = vpop.permute.xlu0 %1036
        %1038 = vrot.lane.b32.xlu0 %v339, 24
        %v1039 = vpop.permute.xlu0 %1038
        %1096 = vrot.lane.b32.xlu0 %v340, 28
        %v1097 = vpop.permute.xlu0 %1096
        %1098 = vrot.lane.b32.xlu0 %v341, 28
        %v1099 = vpop.permute.xlu0 %1098
        %1100 = vrot.lane.b32.xlu0 %v342, 28
        %v1101 = vpop.permute.xlu0 %1100
        %1102 = vrot.lane.b32.xlu0 %v343, 28
        %v1103 = vpop.permute.xlu0 %1102
        %1104 = vrot.lane.b32.xlu0 %v344, 28
        %v1105 = vpop.permute.xlu0 %1104
        %1106 = vrot.lane.b32.xlu0 %v345, 28
        %v1107 = vpop.permute.xlu0 %1106
        %1108 = vrot.lane.b32.xlu0 %v346, 28
        %v1109 = vpop.permute.xlu0 %1108
        %1110 = vrot.lane.b32.xlu0 %v347, 28
        %v1111 = vpop.permute.xlu0 %1110
        %1112 = vrot.lane.b32.xlu0 %v348, 28
        %v1113 = vpop.permute.xlu0 %1112
        %1114 = vrot.lane.b32.xlu0 %v349, 28
        %v1115 = vpop.permute.xlu0 %1114
        %1116 = vrot.lane.b32.xlu0 %v350, 28
        %v1117 = vpop.permute.xlu0 %1116
        %1118 = vrot.lane.b32.xlu0 %v351, 28
        %v1119 = vpop.permute.xlu0 %1118
        %1120 = vrot.lane.b32.xlu0 %v352, 28
        %v1121 = vpop.permute.xlu0 %1120
        %1122 = vrot.lane.b32.xlu0 %v353, 28
        %v1123 = vpop.permute.xlu0 %1122
        %1124 = vrot.lane.b32.xlu0 %v354, 28
        %v1125 = vpop.permute.xlu0 %1124
        %1126 = vrot.lane.b32.xlu0 %v355, 28
        %v1127 = vpop.permute.xlu0 %1126
        %1128 = vrot.lane.b32.xlu0 %v356, 28
        %v1129 = vpop.permute.xlu0 %1128
        %1130 = vrot.lane.b32.xlu0 %v357, 28
        %v1131 = vpop.permute.xlu0 %1130
        %1132 = vrot.lane.b32.xlu0 %v358, 28
        %v1133 = vpop.permute.xlu0 %1132
        %1134 = vrot.lane.b32.xlu0 %v359, 28
        %v1135 = vpop.permute.xlu0 %1134
        %1136 = vrot.lane.b32.xlu0 %v360, 28
        %v1137 = vpop.permute.xlu0 %1136
        %1138 = vrot.lane.b32.xlu0 %v361, 28
        %v1139 = vpop.permute.xlu0 %1138
        %1140 = vrot.lane.b32.xlu0 %v362, 28
        %v1141 = vpop.permute.xlu0 %1140
        %1142 = vrot.lane.b32.xlu0 %v363, 28
        %v1143 = vpop.permute.xlu0 %1142
        %1144 = vrot.lane.b32.xlu0 %v364, 28
        %v1145 = vpop.permute.xlu0 %1144
        %1146 = vrot.lane.b32.xlu0 %v365, 28
        %v1147 = vpop.permute.xlu0 %1146
        %1148 = vrot.lane.b32.xlu0 %v366, 28
        %v1149 = vpop.permute.xlu0 %1148
        %1150 = vrot.lane.b32.xlu0 %v367, 28
        %v1151 = vpop.permute.xlu0 %1150
        %1208 = vrot.lane.b32.xlu0 %v368, 32
        %v1209 = vpop.permute.xlu0 %1208
        %1210 = vrot.lane.b32.xlu0 %v369, 32
        %v1211 = vpop.permute.xlu0 %1210
        %1212 = vrot.lane.b32.xlu0 %v370, 32
        %v1213 = vpop.permute.xlu0 %1212
        %1214 = vrot.lane.b32.xlu0 %v371, 32
        %v1215 = vpop.permute.xlu0 %1214
        %1216 = vrot.lane.b32.xlu0 %v372, 32
        %v1217 = vpop.permute.xlu0 %1216
        %1218 = vrot.lane.b32.xlu0 %v373, 32
        %v1219 = vpop.permute.xlu0 %1218
        %1220 = vrot.lane.b32.xlu0 %v374, 32
        %v1221 = vpop.permute.xlu0 %1220
        %1222 = vrot.lane.b32.xlu0 %v375, 32
        %v1223 = vpop.permute.xlu0 %1222
        %1224 = vrot.lane.b32.xlu0 %v376, 32
        %v1225 = vpop.permute.xlu0 %1224
        %1226 = vrot.lane.b32.xlu0 %v377, 32
        %v1227 = vpop.permute.xlu0 %1226
        %1228 = vrot.lane.b32.xlu0 %v378, 32
        %v1229 = vpop.permute.xlu0 %1228
        %1230 = vrot.lane.b32.xlu0 %v379, 32
        %v1231 = vpop.permute.xlu0 %1230
        %1232 = vrot.lane.b32.xlu0 %v380, 32
        %v1233 = vpop.permute.xlu0 %1232
        %1234 = vrot.lane.b32.xlu0 %v381, 32
        %v1235 = vpop.permute.xlu0 %1234
        %1236 = vrot.lane.b32.xlu0 %v382, 32
        %v1237 = vpop.permute.xlu0 %1236
        %1238 = vrot.lane.b32.xlu0 %v383, 32
        %v1239 = vpop.permute.xlu0 %1238
        %1240 = vrot.lane.b32.xlu0 %v384, 32
        %v1241 = vpop.permute.xlu0 %1240
        %1242 = vrot.lane.b32.xlu0 %v385, 32
        %v1243 = vpop.permute.xlu0 %1242
        %1244 = vrot.lane.b32.xlu0 %v386, 32
        %v1245 = vpop.permute.xlu0 %1244
        %1246 = vrot.lane.b32.xlu0 %v387, 32
        %v1247 = vpop.permute.xlu0 %1246
        %1248 = vrot.lane.b32.xlu0 %v388, 32
        %v1249 = vpop.permute.xlu0 %1248
        %1250 = vrot.lane.b32.xlu0 %v389, 32
        %v1251 = vpop.permute.xlu0 %1250
        %1252 = vrot.lane.b32.xlu0 %v390, 32
        %v1253 = vpop.permute.xlu0 %1252
        %1254 = vrot.lane.b32.xlu0 %v391, 32
        %v1255 = vpop.permute.xlu0 %1254
        %1256 = vrot.lane.b32.xlu0 %v392, 32
        %v1257 = vpop.permute.xlu0 %1256
        %1258 = vrot.lane.b32.xlu0 %v393, 32
        %v1259 = vpop.permute.xlu0 %1258
        %1260 = vrot.lane.b32.xlu0 %v394, 32
        %v1261 = vpop.permute.xlu0 %1260
        %1262 = vrot.lane.b32.xlu0 %v395, 32
        %v1263 = vpop.permute.xlu0 %1262
        %vm1292 = vcmask 31744
        %v1293 = vsel %vm1292, %v142, %v425
        %v1294 = vsel %vm1292, %v143, %v427
        %v1295 = vsel %vm1292, %v144, %v429
        %v1296 = vsel %vm1292, %v145, %v431
        %v1297 = vsel %vm1292, %v146, %v433
        %v1298 = vsel %vm1292, %v147, %v435
        %v1299 = vsel %vm1292, %v148, %v437
        %v1300 = vsel %vm1292, %v149, %v439
        %v1301 = vsel %vm1292, %v150, %v441
        %v1302 = vsel %vm1292, %v151, %v443
        %v1303 = vsel %vm1292, %v152, %v445
        %v1304 = vsel %vm1292, %v153, %v447
        %v1305 = vsel %vm1292, %v154, %v449
        %v1306 = vsel %vm1292, %v155, %v451
        %v1307 = vsel %vm1292, %v156, %v453
        %v1308 = vsel %vm1292, %v157, %v455
        %v1309 = vsel %vm1292, %v158, %v457
        %v1310 = vsel %vm1292, %v159, %v459
        %v1311 = vsel %vm1292, %v160, %v461
        %v1312 = vsel %vm1292, %v161, %v463
        %v1313 = vsel %vm1292, %v162, %v465
        %v1314 = vsel %vm1292, %v163, %v467
        %v1315 = vsel %vm1292, %v164, %v469
        %v1316 = vsel %vm1292, %v165, %v471
        %v1317 = vsel %vm1292, %v166, %v473
        %v1318 = vsel %vm1292, %v167, %v475
        %v1319 = vsel %vm1292, %v168, %v477
        %v1320 = vsel %vm1292, %v169, %v479
        %vm1321 = vcmask 64512
        %v1322 = vsel %vm1321, %v1293, %v537
        %v1323 = vsel %vm1321, %v1294, %v539
        %v1324 = vsel %vm1321, %v1295, %v541
        %v1325 = vsel %vm1321, %v1296, %v543
        %v1326 = vsel %vm1321, %v1297, %v545
        %v1327 = vsel %vm1321, %v1298, %v547
        %v1328 = vsel %vm1321, %v1299, %v549
        %v1329 = vsel %vm1321, %v1300, %v551
        %v1330 = vsel %vm1321, %v1301, %v553
        %v1331 = vsel %vm1321, %v1302, %v555
        %v1332 = vsel %vm1321, %v1303, %v557
        %v1333 = vsel %vm1321, %v1304, %v559
        %v1334 = vsel %vm1321, %v1305, %v561
        %v1335 = vsel %vm1321, %v1306, %v563
        %v1336 = vsel %vm1321, %v1307, %v565
        %v1337 = vsel %vm1321, %v1308, %v567
        %v1338 = vsel %vm1321, %v1309, %v569
        %v1339 = vsel %vm1321, %v1310, %v571
        %v1340 = vsel %vm1321, %v1311, %v573
        %v1341 = vsel %vm1321, %v1312, %v575
        %v1342 = vsel %vm1321, %v1313, %v577
        %v1343 = vsel %vm1321, %v1314, %v579
        %v1344 = vsel %vm1321, %v1315, %v581
        %v1345 = vsel %vm1321, %v1316, %v583
        %v1346 = vsel %vm1321, %v1317, %v585
        %v1347 = vsel %vm1321, %v1318, %v587
        %v1348 = vsel %vm1321, %v1319, %v589
        %v1349 = vsel %vm1321, %v1320, %v591
        %vm1350 = vcmask 97280
        %v1351 = vsel %vm1350, %v1322, %v649
        %v1352 = vsel %vm1350, %v1323, %v651
        %v1353 = vsel %vm1350, %v1324, %v653
        %v1354 = vsel %vm1350, %v1325, %v655
        %v1355 = vsel %vm1350, %v1326, %v657
        %v1356 = vsel %vm1350, %v1327, %v659
        %v1357 = vsel %vm1350, %v1328, %v661
        %v1358 = vsel %vm1350, %v1329, %v663
        %v1359 = vsel %vm1350, %v1330, %v665
        %v1360 = vsel %vm1350, %v1331, %v667
        %v1361 = vsel %vm1350, %v1332, %v669
        %v1362 = vsel %vm1350, %v1333, %v671
        %v1363 = vsel %vm1350, %v1334, %v673
        %v1364 = vsel %vm1350, %v1335, %v675
        %v1365 = vsel %vm1350, %v1336, %v677
        %v1366 = vsel %vm1350, %v1337, %v679
        %v1367 = vsel %vm1350, %v1338, %v681
        %v1368 = vsel %vm1350, %v1339, %v683
        %v1369 = vsel %vm1350, %v1340, %v685
        %v1370 = vsel %vm1350, %v1341, %v687
        %v1371 = vsel %vm1350, %v1342, %v689
        %v1372 = vsel %vm1350, %v1343, %v691
        %v1373 = vsel %vm1350, %v1344, %v693
        %v1374 = vsel %vm1350, %v1345, %v695
        %v1375 = vsel %vm1350, %v1346, %v697
        %v1376 = vsel %vm1350, %v1347, %v699
        %v1377 = vsel %vm1350, %v1348, %v701
        %v1378 = vsel %vm1350, %v1349, %v703
        %vm1379 = vcmask 130048
        %v1380 = vsel %vm1379, %v1351, %v761
        %v1381 = vsel %vm1379, %v1352, %v763
        %v1382 = vsel %vm1379, %v1353, %v765
        %v1383 = vsel %vm1379, %v1354, %v767
        %v1384 = vsel %vm1379, %v1355, %v769
        %v1385 = vsel %vm1379, %v1356, %v771
        %v1386 = vsel %vm1379, %v1357, %v773
        %v1387 = vsel %vm1379, %v1358, %v775
        %v1388 = vsel %vm1379, %v1359, %v777
        %v1389 = vsel %vm1379, %v1360, %v779
        %v1390 = vsel %vm1379, %v1361, %v781
        %v1391 = vsel %vm1379, %v1362, %v783
        %v1392 = vsel %vm1379, %v1363, %v785
        %v1393 = vsel %vm1379, %v1364, %v787
        %v1394 = vsel %vm1379, %v1365, %v789
        %v1395 = vsel %vm1379, %v1366, %v791
        %v1396 = vsel %vm1379, %v1367, %v793
        %v1397 = vsel %vm1379, %v1368, %v795
        %v1398 = vsel %vm1379, %v1369, %v797
        %v1399 = vsel %vm1379, %v1370, %v799
        %v1400 = vsel %vm1379, %v1371, %v801
        %v1401 = vsel %vm1379, %v1372, %v803
        %v1402 = vsel %vm1379, %v1373, %v805
        %v1403 = vsel %vm1379, %v1374, %v807
        %v1404 = vsel %vm1379, %v1375, %v809
        %v1405 = vsel %vm1379, %v1376, %v811
        %v1406 = vsel %vm1379, %v1377, %v813
        %v1407 = vsel %vm1379, %v1378, %v815
        %vm1408 = vcmask 162816
        %v1409 = vsel %vm1408, %v1380, %v873
        %v1410 = vsel %vm1408, %v1381, %v875
        %v1411 = vsel %vm1408, %v1382, %v877
        %v1412 = vsel %vm1408, %v1383, %v879
        %v1413 = vsel %vm1408, %v1384, %v881
        %v1414 = vsel %vm1408, %v1385, %v883
        %v1415 = vsel %vm1408, %v1386, %v885
        %v1416 = vsel %vm1408, %v1387, %v887
        %v1417 = vsel %vm1408, %v1388, %v889
        %v1418 = vsel %vm1408, %v1389, %v891
        %v1419 = vsel %vm1408, %v1390, %v893
        %v1420 = vsel %vm1408, %v1391, %v895
        %v1421 = vsel %vm1408, %v1392, %v897
        %v1422 = vsel %vm1408, %v1393, %v899
        %v1423 = vsel %vm1408, %v1394, %v901
        %v1424 = vsel %vm1408, %v1395, %v903
        %v1425 = vsel %vm1408, %v1396, %v905
        %v1426 = vsel %vm1408, %v1397, %v907
        %v1427 = vsel %vm1408, %v1398, %v909
        %v1428 = vsel %vm1408, %v1399, %v911
        %v1429 = vsel %vm1408, %v1400, %v913
        %v1430 = vsel %vm1408, %v1401, %v915
        %v1431 = vsel %vm1408, %v1402, %v917
        %v1432 = vsel %vm1408, %v1403, %v919
        %v1433 = vsel %vm1408, %v1404, %v921
        %v1434 = vsel %vm1408, %v1405, %v923
        %v1435 = vsel %vm1408, %v1406, %v925
        %v1436 = vsel %vm1408, %v1407, %v927
        %vm1437 = vcmask 195584
        %v1438 = vsel %vm1437, %v1409, %v985
        %v1439 = vsel %vm1437, %v1410, %v987
        %v1440 = vsel %vm1437, %v1411, %v989
        %v1441 = vsel %vm1437, %v1412, %v991
        %v1442 = vsel %vm1437, %v1413, %v993
        %v1443 = vsel %vm1437, %v1414, %v995
        %v1444 = vsel %vm1437, %v1415, %v997
        %v1445 = vsel %vm1437, %v1416, %v999
        %v1446 = vsel %vm1437, %v1417, %v1001
        %v1447 = vsel %vm1437, %v1418, %v1003
        %v1448 = vsel %vm1437, %v1419, %v1005
        %v1449 = vsel %vm1437, %v1420, %v1007
        %v1450 = vsel %vm1437, %v1421, %v1009
        %v1451 = vsel %vm1437, %v1422, %v1011
        %v1452 = vsel %vm1437, %v1423, %v1013
        %v1453 = vsel %vm1437, %v1424, %v1015
        %v1454 = vsel %vm1437, %v1425, %v1017
        %v1455 = vsel %vm1437, %v1426, %v1019
        %v1456 = vsel %vm1437, %v1427, %v1021
        %v1457 = vsel %vm1437, %v1428, %v1023
        %v1458 = vsel %vm1437, %v1429, %v1025
        %v1459 = vsel %vm1437, %v1430, %v1027
        %v1460 = vsel %vm1437, %v1431, %v1029
        %v1461 = vsel %vm1437, %v1432, %v1031
        %v1462 = vsel %vm1437, %v1433, %v1033
        %v1463 = vsel %vm1437, %v1434, %v1035
        %v1464 = vsel %vm1437, %v1435, %v1037
        %v1465 = vsel %vm1437, %v1436, %v1039
        %vm1466 = vcmask 228352
        %v1467 = vsel %vm1466, %v1438, %v1097
        %v1468 = vsel %vm1466, %v1439, %v1099
        %v1469 = vsel %vm1466, %v1440, %v1101
        %v1470 = vsel %vm1466, %v1441, %v1103
        %v1471 = vsel %vm1466, %v1442, %v1105
        %v1472 = vsel %vm1466, %v1443, %v1107
        %v1473 = vsel %vm1466, %v1444, %v1109
        %v1474 = vsel %vm1466, %v1445, %v1111
        %v1475 = vsel %vm1466, %v1446, %v1113
        %v1476 = vsel %vm1466, %v1447, %v1115
        %v1477 = vsel %vm1466, %v1448, %v1117
        %v1478 = vsel %vm1466, %v1449, %v1119
        %v1479 = vsel %vm1466, %v1450, %v1121
        %v1480 = vsel %vm1466, %v1451, %v1123
        %v1481 = vsel %vm1466, %v1452, %v1125
        %v1482 = vsel %vm1466, %v1453, %v1127
        %v1483 = vsel %vm1466, %v1454, %v1129
        %v1484 = vsel %vm1466, %v1455, %v1131
        %v1485 = vsel %vm1466, %v1456, %v1133
        %v1486 = vsel %vm1466, %v1457, %v1135
        %v1487 = vsel %vm1466, %v1458, %v1137
        %v1488 = vsel %vm1466, %v1459, %v1139
        %v1489 = vsel %vm1466, %v1460, %v1141
        %v1490 = vsel %vm1466, %v1461, %v1143
        %v1491 = vsel %vm1466, %v1462, %v1145
        %v1492 = vsel %vm1466, %v1463, %v1147
        %v1493 = vsel %vm1466, %v1464, %v1149
        %v1494 = vsel %vm1466, %v1465, %v1151
        %vm1495 = vcmask 261120
        %v1496 = vsel %vm1495, %v1467, %v1209
        %v1497 = vsel %vm1495, %v1468, %v1211
        %v1498 = vsel %vm1495, %v1469, %v1213
        %v1499 = vsel %vm1495, %v1470, %v1215
        %v1500 = vsel %vm1495, %v1471, %v1217
        %v1501 = vsel %vm1495, %v1472, %v1219
        %v1502 = vsel %vm1495, %v1473, %v1221
        %v1503 = vsel %vm1495, %v1474, %v1223
        %v1504 = vsel %vm1495, %v1475, %v1225
        %v1505 = vsel %vm1495, %v1476, %v1227
        %v1506 = vsel %vm1495, %v1477, %v1229
        %v1507 = vsel %vm1495, %v1478, %v1231
        %v1508 = vsel %vm1495, %v1479, %v1233
        %v1509 = vsel %vm1495, %v1480, %v1235
        %v1510 = vsel %vm1495, %v1481, %v1237
        %v1511 = vsel %vm1495, %v1482, %v1239
        %v1512 = vsel %vm1495, %v1483, %v1241
        %v1513 = vsel %vm1495, %v1484, %v1243
        %v1514 = vsel %vm1495, %v1485, %v1245
        %v1515 = vsel %vm1495, %v1486, %v1247
        %v1516 = vsel %vm1495, %v1487, %v1249
        %v1517 = vsel %vm1495, %v1488, %v1251
        %v1518 = vsel %vm1495, %v1489, %v1253
        %v1519 = vsel %vm1495, %v1490, %v1255
        %v1520 = vsel %vm1495, %v1491, %v1257
        %v1521 = vsel %vm1495, %v1492, %v1259
        %v1522 = vsel %vm1495, %v1493, %v1261
        %v1523 = vsel %vm1495, %v1494, %v1263
        %v1552 = vcombine.high %v1496, %v1496
        %v1554 = vunpack.c.l.s4 1983009808
        %v1555 = vunpack.c.0.s8 %v1554
        %v1556 = vlaneseq
        %v1557 = vshrl.u32 %v1556, 7
        %v1558 = vsub.s32 %v1555, %v1557
        %v1559 = vrot.slane %v1496, %v1558
        %v1561 = vunpack.c.l.s4 1983009808
        %v1562 = vunpack.c.0.s8 %v1561
        %v1563 = vlaneseq
        %v1564 = vshrl.u32 %v1563, 7
        %v1565 = vsub.s32 %v1562, %v1564
        %v1566 = vrot.slane %v1552, %v1565
        %v1567 = vcombine.high %v1559, %v1559
        %v1568 = vcombine.high %v1566, %v1566
        %v1569 = vcombine.high %v1497, %v1497
        %v1571 = vunpack.c.l.s4 1983009808
        %v1572 = vunpack.c.0.s8 %v1571
        %v1573 = vlaneseq
        %v1574 = vshrl.u32 %v1573, 7
        %v1575 = vsub.s32 %v1572, %v1574
        %v1576 = vrot.slane %v1497, %v1575
        %v1578 = vunpack.c.l.s4 1983009808
        %v1579 = vunpack.c.0.s8 %v1578
        %v1580 = vlaneseq
        %v1581 = vshrl.u32 %v1580, 7
        %v1582 = vsub.s32 %v1579, %v1581
        %v1583 = vrot.slane %v1569, %v1582
        %v1584 = vcombine.high %v1576, %v1576
        %v1585 = vcombine.high %v1498, %v1498
        %v1587 = vunpack.c.l.s4 1983009808
        %v1588 = vunpack.c.0.s8 %v1587
        %v1589 = vlaneseq
        %v1590 = vshrl.u32 %v1589, 7
        %v1591 = vsub.s32 %v1588, %v1590
        %v1592 = vrot.slane %v1498, %v1591
        %v1594 = vunpack.c.l.s4 1983009808
        %v1595 = vunpack.c.0.s8 %v1594
        %v1596 = vlaneseq
        %v1597 = vshrl.u32 %v1596, 7
        %v1598 = vsub.s32 %v1595, %v1597
        %v1599 = vrot.slane %v1585, %v1598
        %v1600 = vcombine.high %v1592, %v1592
        %v1601 = vcombine.high %v1599, %v1599
        %v1602 = vcombine.high %v1499, %v1499
        %v1604 = vunpack.c.l.s4 1983009808
        %v1605 = vunpack.c.0.s8 %v1604
        %v1606 = vlaneseq
        %v1607 = vshrl.u32 %v1606, 7
        %v1608 = vsub.s32 %v1605, %v1607
        %v1609 = vrot.slane %v1499, %v1608
        %v1611 = vunpack.c.l.s4 1983009808
        %v1612 = vunpack.c.0.s8 %v1611
        %v1613 = vlaneseq
        %v1614 = vshrl.u32 %v1613, 7
        %v1615 = vsub.s32 %v1612, %v1614
        %v1616 = vrot.slane %v1602, %v1615
        %v1617 = vcombine.high %v1609, %v1609
        %v1618 = vcombine.high %v1500, %v1500
        %v1620 = vunpack.c.l.s4 1983009808
        %v1621 = vunpack.c.0.s8 %v1620
        %v1622 = vlaneseq
        %v1623 = vshrl.u32 %v1622, 7
        %v1624 = vsub.s32 %v1621, %v1623
        %v1625 = vrot.slane %v1500, %v1624
        %v1627 = vunpack.c.l.s4 1983009808
        %v1628 = vunpack.c.0.s8 %v1627
        %v1629 = vlaneseq
        %v1630 = vshrl.u32 %v1629, 7
        %v1631 = vsub.s32 %v1628, %v1630
        %v1632 = vrot.slane %v1618, %v1631
        %v1633 = vcombine.high %v1625, %v1625
        %v1634 = vcombine.high %v1632, %v1632
        %v1635 = vcombine.high %v1501, %v1501
        %v1637 = vunpack.c.l.s4 1983009808
        %v1638 = vunpack.c.0.s8 %v1637
        %v1639 = vlaneseq
        %v1640 = vshrl.u32 %v1639, 7
        %v1641 = vsub.s32 %v1638, %v1640
        %v1642 = vrot.slane %v1501, %v1641
        %v1644 = vunpack.c.l.s4 1983009808
        %v1645 = vunpack.c.0.s8 %v1644
        %v1646 = vlaneseq
        %v1647 = vshrl.u32 %v1646, 7
        %v1648 = vsub.s32 %v1645, %v1647
        %v1649 = vrot.slane %v1635, %v1648
        %v1650 = vcombine.high %v1642, %v1642
        %v1651 = vcombine.high %v1502, %v1502
        %v1653 = vunpack.c.l.s4 1983009808
        %v1654 = vunpack.c.0.s8 %v1653
        %v1655 = vlaneseq
        %v1656 = vshrl.u32 %v1655, 7
        %v1657 = vsub.s32 %v1654, %v1656
        %v1658 = vrot.slane %v1502, %v1657
        %v1660 = vunpack.c.l.s4 1983009808
        %v1661 = vunpack.c.0.s8 %v1660
        %v1662 = vlaneseq
        %v1663 = vshrl.u32 %v1662, 7
        %v1664 = vsub.s32 %v1661, %v1663
        %v1665 = vrot.slane %v1651, %v1664
        %v1666 = vcombine.high %v1658, %v1658
        %v1667 = vcombine.high %v1665, %v1665
        %v1668 = vcombine.high %v1503, %v1503
        %v1670 = vunpack.c.l.s4 1983009808
        %v1671 = vunpack.c.0.s8 %v1670
        %v1672 = vlaneseq
        %v1673 = vshrl.u32 %v1672, 7
        %v1674 = vsub.s32 %v1671, %v1673
        %v1675 = vrot.slane %v1503, %v1674
        %v1677 = vunpack.c.l.s4 1983009808
        %v1678 = vunpack.c.0.s8 %v1677
        %v1679 = vlaneseq
        %v1680 = vshrl.u32 %v1679, 7
        %v1681 = vsub.s32 %v1678, %v1680
        %v1682 = vrot.slane %v1668, %v1681
        %v1683 = vcombine.high %v1675, %v1675
        %v1684 = vcombine.high %v1504, %v1504
        %v1686 = vunpack.c.l.s4 1983009808
        %v1687 = vunpack.c.0.s8 %v1686
        %v1688 = vlaneseq
        %v1689 = vshrl.u32 %v1688, 7
        %v1690 = vsub.s32 %v1687, %v1689
        %v1691 = vrot.slane %v1504, %v1690
        %v1693 = vunpack.c.l.s4 1983009808
        %v1694 = vunpack.c.0.s8 %v1693
        %v1695 = vlaneseq
        %v1696 = vshrl.u32 %v1695, 7
        %v1697 = vsub.s32 %v1694, %v1696
        %v1698 = vrot.slane %v1684, %v1697
        %v1699 = vcombine.high %v1691, %v1691
        %v1700 = vcombine.high %v1698, %v1698
        %v1701 = vcombine.high %v1505, %v1505
        %v1703 = vunpack.c.l.s4 1983009808
        %v1704 = vunpack.c.0.s8 %v1703
        %v1705 = vlaneseq
        %v1706 = vshrl.u32 %v1705, 7
        %v1707 = vsub.s32 %v1704, %v1706
        %v1708 = vrot.slane %v1505, %v1707
        %v1710 = vunpack.c.l.s4 1983009808
        %v1711 = vunpack.c.0.s8 %v1710
        %v1712 = vlaneseq
        %v1713 = vshrl.u32 %v1712, 7
        %v1714 = vsub.s32 %v1711, %v1713
        %v1715 = vrot.slane %v1701, %v1714
        %v1716 = vcombine.high %v1708, %v1708
        %v1717 = vcombine.high %v1506, %v1506
        %v1719 = vunpack.c.l.s4 1983009808
        %v1720 = vunpack.c.0.s8 %v1719
        %v1721 = vlaneseq
        %v1722 = vshrl.u32 %v1721, 7
        %v1723 = vsub.s32 %v1720, %v1722
        %v1724 = vrot.slane %v1506, %v1723
        %v1726 = vunpack.c.l.s4 1983009808
        %v1727 = vunpack.c.0.s8 %v1726
        %v1728 = vlaneseq
        %v1729 = vshrl.u32 %v1728, 7
        %v1730 = vsub.s32 %v1727, %v1729
        %v1731 = vrot.slane %v1717, %v1730
        %v1732 = vcombine.high %v1724, %v1724
        %v1733 = vcombine.high %v1731, %v1731
        %v1734 = vcombine.high %v1507, %v1507
        %v1736 = vunpack.c.l.s4 1983009808
        %v1737 = vunpack.c.0.s8 %v1736
        %v1738 = vlaneseq
        %v1739 = vshrl.u32 %v1738, 7
        %v1740 = vsub.s32 %v1737, %v1739
        %v1741 = vrot.slane %v1507, %v1740
        %v1743 = vunpack.c.l.s4 1983009808
        %v1744 = vunpack.c.0.s8 %v1743
        %v1745 = vlaneseq
        %v1746 = vshrl.u32 %v1745, 7
        %v1747 = vsub.s32 %v1744, %v1746
        %v1748 = vrot.slane %v1734, %v1747
        %v1749 = vcombine.high %v1741, %v1741
        %v1750 = vcombine.high %v1508, %v1508
        %v1752 = vunpack.c.l.s4 1983009808
        %v1753 = vunpack.c.0.s8 %v1752
        %v1754 = vlaneseq
        %v1755 = vshrl.u32 %v1754, 7
        %v1756 = vsub.s32 %v1753, %v1755
        %v1757 = vrot.slane %v1508, %v1756
        %v1759 = vunpack.c.l.s4 1983009808
        %v1760 = vunpack.c.0.s8 %v1759
        %v1761 = vlaneseq
        %v1762 = vshrl.u32 %v1761, 7
        %v1763 = vsub.s32 %v1760, %v1762
        %v1764 = vrot.slane %v1750, %v1763
        %v1765 = vcombine.high %v1757, %v1757
        %v1766 = vcombine.high %v1764, %v1764
        %v1767 = vcombine.high %v1509, %v1509
        %v1769 = vunpack.c.l.s4 1983009808
        %v1770 = vunpack.c.0.s8 %v1769
        %v1771 = vlaneseq
        %v1772 = vshrl.u32 %v1771, 7
        %v1773 = vsub.s32 %v1770, %v1772
        %v1774 = vrot.slane %v1509, %v1773
        %v1776 = vunpack.c.l.s4 1983009808
        %v1777 = vunpack.c.0.s8 %v1776
        %v1778 = vlaneseq
        %v1779 = vshrl.u32 %v1778, 7
        %v1780 = vsub.s32 %v1777, %v1779
        %v1781 = vrot.slane %v1767, %v1780
        %v1782 = vcombine.high %v1774, %v1774
        %v1783 = vcombine.high %v1510, %v1510
        %v1785 = vunpack.c.l.s4 1983009808
        %v1786 = vunpack.c.0.s8 %v1785
        %v1787 = vlaneseq
        %v1788 = vshrl.u32 %v1787, 7
        %v1789 = vsub.s32 %v1786, %v1788
        %v1790 = vrot.slane %v1510, %v1789
        %v1792 = vunpack.c.l.s4 1983009808
        %v1793 = vunpack.c.0.s8 %v1792
        %v1794 = vlaneseq
        %v1795 = vshrl.u32 %v1794, 7
        %v1796 = vsub.s32 %v1793, %v1795
        %v1797 = vrot.slane %v1783, %v1796
        %v1798 = vcombine.high %v1790, %v1790
        %v1799 = vcombine.high %v1797, %v1797
        %v1800 = vcombine.high %v1511, %v1511
        %v1802 = vunpack.c.l.s4 1983009808
        %v1803 = vunpack.c.0.s8 %v1802
        %v1804 = vlaneseq
        %v1805 = vshrl.u32 %v1804, 7
        %v1806 = vsub.s32 %v1803, %v1805
        %v1807 = vrot.slane %v1511, %v1806
        %v1809 = vunpack.c.l.s4 1983009808
        %v1810 = vunpack.c.0.s8 %v1809
        %v1811 = vlaneseq
        %v1812 = vshrl.u32 %v1811, 7
        %v1813 = vsub.s32 %v1810, %v1812
        %v1814 = vrot.slane %v1800, %v1813
        %v1815 = vcombine.high %v1807, %v1807
        %v1816 = vcombine.high %v1512, %v1512
        %v1818 = vunpack.c.l.s4 1983009808
        %v1819 = vunpack.c.0.s8 %v1818
        %v1820 = vlaneseq
        %v1821 = vshrl.u32 %v1820, 7
        %v1822 = vsub.s32 %v1819, %v1821
        %v1823 = vrot.slane %v1512, %v1822
        %v1825 = vunpack.c.l.s4 1983009808
        %v1826 = vunpack.c.0.s8 %v1825
        %v1827 = vlaneseq
        %v1828 = vshrl.u32 %v1827, 7
        %v1829 = vsub.s32 %v1826, %v1828
        %v1830 = vrot.slane %v1816, %v1829
        %v1831 = vcombine.high %v1823, %v1823
        %v1832 = vcombine.high %v1830, %v1830
        %v1833 = vcombine.high %v1513, %v1513
        %v1835 = vunpack.c.l.s4 1983009808
        %v1836 = vunpack.c.0.s8 %v1835
        %v1837 = vlaneseq
        %v1838 = vshrl.u32 %v1837, 7
        %v1839 = vsub.s32 %v1836, %v1838
        %v1840 = vrot.slane %v1513, %v1839
        %v1842 = vunpack.c.l.s4 1983009808
        %v1843 = vunpack.c.0.s8 %v1842
        %v1844 = vlaneseq
        %v1845 = vshrl.u32 %v1844, 7
        %v1846 = vsub.s32 %v1843, %v1845
        %v1847 = vrot.slane %v1833, %v1846
        %v1848 = vcombine.high %v1840, %v1840
        %v1849 = vcombine.high %v1514, %v1514
        %v1851 = vunpack.c.l.s4 1983009808
        %v1852 = vunpack.c.0.s8 %v1851
        %v1853 = vlaneseq
        %v1854 = vshrl.u32 %v1853, 7
        %v1855 = vsub.s32 %v1852, %v1854
        %v1856 = vrot.slane %v1514, %v1855
        %v1858 = vunpack.c.l.s4 1983009808
        %v1859 = vunpack.c.0.s8 %v1858
        %v1860 = vlaneseq
        %v1861 = vshrl.u32 %v1860, 7
        %v1862 = vsub.s32 %v1859, %v1861
        %v1863 = vrot.slane %v1849, %v1862
        %v1864 = vcombine.high %v1856, %v1856
        %v1865 = vcombine.high %v1863, %v1863
        %v1866 = vcombine.high %v1515, %v1515
        %v1868 = vunpack.c.l.s4 1983009808
        %v1869 = vunpack.c.0.s8 %v1868
        %v1870 = vlaneseq
        %v1871 = vshrl.u32 %v1870, 7
        %v1872 = vsub.s32 %v1869, %v1871
        %v1873 = vrot.slane %v1515, %v1872
        %v1875 = vunpack.c.l.s4 1983009808
        %v1876 = vunpack.c.0.s8 %v1875
        %v1877 = vlaneseq
        %v1878 = vshrl.u32 %v1877, 7
        %v1879 = vsub.s32 %v1876, %v1878
        %v1880 = vrot.slane %v1866, %v1879
        %v1881 = vcombine.high %v1873, %v1873
        %v1882 = vcombine.high %v1516, %v1516
        %v1884 = vunpack.c.l.s4 1983009808
        %v1885 = vunpack.c.0.s8 %v1884
        %v1886 = vlaneseq
        %v1887 = vshrl.u32 %v1886, 7
        %v1888 = vsub.s32 %v1885, %v1887
        %v1889 = vrot.slane %v1516, %v1888
        %v1891 = vunpack.c.l.s4 1983009808
        %v1892 = vunpack.c.0.s8 %v1891
        %v1893 = vlaneseq
        %v1894 = vshrl.u32 %v1893, 7
        %v1895 = vsub.s32 %v1892, %v1894
        %v1896 = vrot.slane %v1882, %v1895
        %v1897 = vcombine.high %v1889, %v1889
        %v1898 = vcombine.high %v1896, %v1896
        %v1899 = vcombine.high %v1517, %v1517
        %v1901 = vunpack.c.l.s4 1983009808
        %v1902 = vunpack.c.0.s8 %v1901
        %v1903 = vlaneseq
        %v1904 = vshrl.u32 %v1903, 7
        %v1905 = vsub.s32 %v1902, %v1904
        %v1906 = vrot.slane %v1517, %v1905
        %v1908 = vunpack.c.l.s4 1983009808
        %v1909 = vunpack.c.0.s8 %v1908
        %v1910 = vlaneseq
        %v1911 = vshrl.u32 %v1910, 7
        %v1912 = vsub.s32 %v1909, %v1911
        %v1913 = vrot.slane %v1899, %v1912
        %v1914 = vcombine.high %v1906, %v1906
        %v1915 = vcombine.high %v1518, %v1518
        %v1917 = vunpack.c.l.s4 1983009808
        %v1918 = vunpack.c.0.s8 %v1917
        %v1919 = vlaneseq
        %v1920 = vshrl.u32 %v1919, 7
        %v1921 = vsub.s32 %v1918, %v1920
        %v1922 = vrot.slane %v1518, %v1921
        %v1924 = vunpack.c.l.s4 1983009808
        %v1925 = vunpack.c.0.s8 %v1924
        %v1926 = vlaneseq
        %v1927 = vshrl.u32 %v1926, 7
        %v1928 = vsub.s32 %v1925, %v1927
        %v1929 = vrot.slane %v1915, %v1928
        %v1930 = vcombine.high %v1922, %v1922
        %v1931 = vcombine.high %v1929, %v1929
        %v1932 = vcombine.high %v1519, %v1519
        %v1934 = vunpack.c.l.s4 1983009808
        %v1935 = vunpack.c.0.s8 %v1934
        %v1936 = vlaneseq
        %v1937 = vshrl.u32 %v1936, 7
        %v1938 = vsub.s32 %v1935, %v1937
        %v1939 = vrot.slane %v1519, %v1938
        %v1941 = vunpack.c.l.s4 1983009808
        %v1942 = vunpack.c.0.s8 %v1941
        %v1943 = vlaneseq
        %v1944 = vshrl.u32 %v1943, 7
        %v1945 = vsub.s32 %v1942, %v1944
        %v1946 = vrot.slane %v1932, %v1945
        %v1947 = vcombine.high %v1939, %v1939
        %v1948 = vcombine.high %v1520, %v1520
        %v1950 = vunpack.c.l.s4 1983009808
        %v1951 = vunpack.c.0.s8 %v1950
        %v1952 = vlaneseq
        %v1953 = vshrl.u32 %v1952, 7
        %v1954 = vsub.s32 %v1951, %v1953
        %v1955 = vrot.slane %v1520, %v1954
        %v1957 = vunpack.c.l.s4 1983009808
        %v1958 = vunpack.c.0.s8 %v1957
        %v1959 = vlaneseq
        %v1960 = vshrl.u32 %v1959, 7
        %v1961 = vsub.s32 %v1958, %v1960
        %v1962 = vrot.slane %v1948, %v1961
        %v1963 = vcombine.high %v1955, %v1955
        %v1964 = vcombine.high %v1962, %v1962
        %v1965 = vcombine.high %v1521, %v1521
        %v1967 = vunpack.c.l.s4 1983009808
        %v1968 = vunpack.c.0.s8 %v1967
        %v1969 = vlaneseq
        %v1970 = vshrl.u32 %v1969, 7
        %v1971 = vsub.s32 %v1968, %v1970
        %v1972 = vrot.slane %v1521, %v1971
        %v1974 = vunpack.c.l.s4 1983009808
        %v1975 = vunpack.c.0.s8 %v1974
        %v1976 = vlaneseq
        %v1977 = vshrl.u32 %v1976, 7
        %v1978 = vsub.s32 %v1975, %v1977
        %v1979 = vrot.slane %v1965, %v1978
        %v1980 = vcombine.high %v1972, %v1972
        %v1981 = vcombine.high %v1522, %v1522
        %v1983 = vunpack.c.l.s4 1983009808
        %v1984 = vunpack.c.0.s8 %v1983
        %v1985 = vlaneseq
        %v1986 = vshrl.u32 %v1985, 7
        %v1987 = vsub.s32 %v1984, %v1986
        %v1988 = vrot.slane %v1522, %v1987
        %v1990 = vunpack.c.l.s4 1983009808
        %v1991 = vunpack.c.0.s8 %v1990
        %v1992 = vlaneseq
        %v1993 = vshrl.u32 %v1992, 7
        %v1994 = vsub.s32 %v1991, %v1993
        %v1995 = vrot.slane %v1981, %v1994
        %v1996 = vcombine.high %v1988, %v1988
        %v1997 = vcombine.high %v1995, %v1995
        %v1998 = vcombine.high %v1523, %v1523
        %v2000 = vunpack.c.l.s4 1983009808
        %v2001 = vunpack.c.0.s8 %v2000
        %v2002 = vlaneseq
        %v2003 = vshrl.u32 %v2002, 7
        %v2004 = vsub.s32 %v2001, %v2003
        %v2005 = vrot.slane %v1523, %v2004
        %v2007 = vunpack.c.l.s4 1983009808
        %v2008 = vunpack.c.0.s8 %v2007
        %v2009 = vlaneseq
        %v2010 = vshrl.u32 %v2009, 7
        %v2011 = vsub.s32 %v2008, %v2010
        %v2012 = vrot.slane %v1998, %v2011
        %v2013 = vcombine.high %v2005, %v2005
        %v2014 = vld [vmem:[%s1] sm:$0xff]
        %v2015 = vcombine.low %v1559, %v1567
        %v2016 = vcombine.low %v1566, %v1568
        %v2018 = vunpack.c.l.s4 1983009808
        %v2019 = vunpack.c.0.s8 %v2018
        %v2020 = vlaneseq
        %v2021 = vshrl.u32 %v2020, 7
        %v2022 = vsub.s32 %v2019, %v2021
        %v2023 = vrot.slane %v2015, %v2022
        %v2025 = vunpack.c.l.s4 1983009808
        %v2026 = vunpack.c.0.s8 %v2025
        %v2027 = vlaneseq
        %v2028 = vshrl.u32 %v2027, 7
        %v2029 = vsub.s32 %v2026, %v2028
        %v2030 = vrot.slane %v2016, %v2029
        %v2031 = vcombine.low %v2023, %v2030
        %v2032 = vcombine.low %v1576, %v1584
        %v2033 = vcombine.low %v1583, %v1592
        %v2035 = vunpack.c.l.s4 1983009808
        %v2036 = vunpack.c.0.s8 %v2035
        %v2037 = vlaneseq
        %v2038 = vshrl.u32 %v2037, 7
        %v2039 = vsub.s32 %v2036, %v2038
        %v2040 = vrot.slane %v2032, %v2039
        %v2042 = vunpack.c.l.s4 1983009808
        %v2043 = vunpack.c.0.s8 %v2042
        %v2044 = vlaneseq
        %v2045 = vshrl.u32 %v2044, 7
        %v2046 = vsub.s32 %v2043, %v2045
        %v2047 = vrot.slane %v2033, %v2046
        %v2048 = vcombine.low %v2040, %v2047
        %v2049 = vcombine.low %v1600, %v1599
        %v2050 = vcombine.low %v1601, %v1609
        %v2052 = vunpack.c.l.s4 1983009808
        %v2053 = vunpack.c.0.s8 %v2052
        %v2054 = vlaneseq
        %v2055 = vshrl.u32 %v2054, 7
        %v2056 = vsub.s32 %v2053, %v2055
        %v2057 = vrot.slane %v2049, %v2056
        %v2059 = vunpack.c.l.s4 1983009808
        %v2060 = vunpack.c.0.s8 %v2059
        %v2061 = vlaneseq
        %v2062 = vshrl.u32 %v2061, 7
        %v2063 = vsub.s32 %v2060, %v2062
        %v2064 = vrot.slane %v2050, %v2063
        %v2065 = vcombine.low %v2057, %v2064
        %v2066 = vcombine.low %v1617, %v1616
        %v2067 = vcombine.low %v1625, %v1633
        %v2069 = vunpack.c.l.s4 1983009808
        %v2070 = vunpack.c.0.s8 %v2069
        %v2071 = vlaneseq
        %v2072 = vshrl.u32 %v2071, 7
        %v2073 = vsub.s32 %v2070, %v2072
        %v2074 = vrot.slane %v2066, %v2073
        %v2076 = vunpack.c.l.s4 1983009808
        %v2077 = vunpack.c.0.s8 %v2076
        %v2078 = vlaneseq
        %v2079 = vshrl.u32 %v2078, 7
        %v2080 = vsub.s32 %v2077, %v2079
        %v2081 = vrot.slane %v2067, %v2080
        %v2082 = vcombine.low %v2074, %v2081
        %v2083 = vcombine.low %v1632, %v1634
        %v2084 = vcombine.low %v1642, %v1650
        %v2086 = vunpack.c.l.s4 1983009808
        %v2087 = vunpack.c.0.s8 %v2086
        %v2088 = vlaneseq
        %v2089 = vshrl.u32 %v2088, 7
        %v2090 = vsub.s32 %v2087, %v2089
        %v2091 = vrot.slane %v2083, %v2090
        %v2093 = vunpack.c.l.s4 1983009808
        %v2094 = vunpack.c.0.s8 %v2093
        %v2095 = vlaneseq
        %v2096 = vshrl.u32 %v2095, 7
        %v2097 = vsub.s32 %v2094, %v2096
        %v2098 = vrot.slane %v2084, %v2097
        %v2099 = vcombine.low %v2091, %v2098
        %v2100 = vcombine.low %v1649, %v1658
        %v2101 = vcombine.low %v1666, %v1665
        %v2103 = vunpack.c.l.s4 1983009808
        %v2104 = vunpack.c.0.s8 %v2103
        %v2105 = vlaneseq
        %v2106 = vshrl.u32 %v2105, 7
        %v2107 = vsub.s32 %v2104, %v2106
        %v2108 = vrot.slane %v2100, %v2107
        %v2110 = vunpack.c.l.s4 1983009808
        %v2111 = vunpack.c.0.s8 %v2110
        %v2112 = vlaneseq
        %v2113 = vshrl.u32 %v2112, 7
        %v2114 = vsub.s32 %v2111, %v2113
        %v2115 = vrot.slane %v2101, %v2114
        %v2116 = vcombine.low %v2108, %v2115
        %v2117 = vcombine.low %v1667, %v1675
        %v2118 = vcombine.low %v1683, %v1682
        %v2120 = vunpack.c.l.s4 1983009808
        %v2121 = vunpack.c.0.s8 %v2120
        %v2122 = vlaneseq
        %v2123 = vshrl.u32 %v2122, 7
        %v2124 = vsub.s32 %v2121, %v2123
        %v2125 = vrot.slane %v2117, %v2124
        %v2127 = vunpack.c.l.s4 1983009808
        %v2128 = vunpack.c.0.s8 %v2127
        %v2129 = vlaneseq
        %v2130 = vshrl.u32 %v2129, 7
        %v2131 = vsub.s32 %v2128, %v2130
        %v2132 = vrot.slane %v2118, %v2131
        %v2133 = vcombine.low %v2125, %v2132
        %v2134 = vcombine.low %v1691, %v1699
        %v2135 = vcombine.low %v1698, %v1700
        %v2137 = vunpack.c.l.s4 1983009808
        %v2138 = vunpack.c.0.s8 %v2137
        %v2139 = vlaneseq
        %v2140 = vshrl.u32 %v2139, 7
        %v2141 = vsub.s32 %v2138, %v2140
        %v2142 = vrot.slane %v2134, %v2141
        %v2144 = vunpack.c.l.s4 1983009808
        %v2145 = vunpack.c.0.s8 %v2144
        %v2146 = vlaneseq
        %v2147 = vshrl.u32 %v2146, 7
        %v2148 = vsub.s32 %v2145, %v2147
        %v2149 = vrot.slane %v2135, %v2148
        %v2150 = vcombine.low %v2142, %v2149
        %v2151 = vcombine.low %v1708, %v1716
        %v2152 = vcombine.low %v1715, %v1724
        %v2154 = vunpack.c.l.s4 1983009808
        %v2155 = vunpack.c.0.s8 %v2154
        %v2156 = vlaneseq
        %v2157 = vshrl.u32 %v2156, 7
        %v2158 = vsub.s32 %v2155, %v2157
        %v2159 = vrot.slane %v2151, %v2158
        %v2161 = vunpack.c.l.s4 1983009808
        %v2162 = vunpack.c.0.s8 %v2161
        %v2163 = vlaneseq
        %v2164 = vshrl.u32 %v2163, 7
        %v2165 = vsub.s32 %v2162, %v2164
        %v2166 = vrot.slane %v2152, %v2165
        %v2167 = vcombine.low %v2159, %v2166
        %v2168 = vcombine.low %v1732, %v1731
        %v2169 = vcombine.low %v1733, %v1741
        %v2171 = vunpack.c.l.s4 1983009808
        %v2172 = vunpack.c.0.s8 %v2171
        %v2173 = vlaneseq
        %v2174 = vshrl.u32 %v2173, 7
        %v2175 = vsub.s32 %v2172, %v2174
        %v2176 = vrot.slane %v2168, %v2175
        %v2178 = vunpack.c.l.s4 1983009808
        %v2179 = vunpack.c.0.s8 %v2178
        %v2180 = vlaneseq
        %v2181 = vshrl.u32 %v2180, 7
        %v2182 = vsub.s32 %v2179, %v2181
        %v2183 = vrot.slane %v2169, %v2182
        %v2184 = vcombine.low %v2176, %v2183
        %v2185 = vcombine.low %v1749, %v1748
        %v2186 = vcombine.low %v1757, %v1765
        %v2188 = vunpack.c.l.s4 1983009808
        %v2189 = vunpack.c.0.s8 %v2188
        %v2190 = vlaneseq
        %v2191 = vshrl.u32 %v2190, 7
        %v2192 = vsub.s32 %v2189, %v2191
        %v2193 = vrot.slane %v2185, %v2192
        %v2195 = vunpack.c.l.s4 1983009808
        %v2196 = vunpack.c.0.s8 %v2195
        %v2197 = vlaneseq
        %v2198 = vshrl.u32 %v2197, 7
        %v2199 = vsub.s32 %v2196, %v2198
        %v2200 = vrot.slane %v2186, %v2199
        %v2201 = vcombine.low %v2193, %v2200
        %v2202 = vcombine.low %v1764, %v1766
        %v2203 = vcombine.low %v1774, %v1782
        %v2205 = vunpack.c.l.s4 1983009808
        %v2206 = vunpack.c.0.s8 %v2205
        %v2207 = vlaneseq
        %v2208 = vshrl.u32 %v2207, 7
        %v2209 = vsub.s32 %v2206, %v2208
        %v2210 = vrot.slane %v2202, %v2209
        %v2212 = vunpack.c.l.s4 1983009808
        %v2213 = vunpack.c.0.s8 %v2212
        %v2214 = vlaneseq
        %v2215 = vshrl.u32 %v2214, 7
        %v2216 = vsub.s32 %v2213, %v2215
        %v2217 = vrot.slane %v2203, %v2216
        %v2218 = vcombine.low %v2210, %v2217
        %v2219 = vcombine.low %v1781, %v1790
        %v2220 = vcombine.low %v1798, %v1797
        %v2222 = vunpack.c.l.s4 1983009808
        %v2223 = vunpack.c.0.s8 %v2222
        %v2224 = vlaneseq
        %v2225 = vshrl.u32 %v2224, 7
        %v2226 = vsub.s32 %v2223, %v2225
        %v2227 = vrot.slane %v2219, %v2226
        %v2229 = vunpack.c.l.s4 1983009808
        %v2230 = vunpack.c.0.s8 %v2229
        %v2231 = vlaneseq
        %v2232 = vshrl.u32 %v2231, 7
        %v2233 = vsub.s32 %v2230, %v2232
        %v2234 = vrot.slane %v2220, %v2233
        %v2235 = vcombine.low %v2227, %v2234
        %v2236 = vcombine.low %v1799, %v1807
        %v2237 = vcombine.low %v1815, %v1814
        %v2239 = vunpack.c.l.s4 1983009808
        %v2240 = vunpack.c.0.s8 %v2239
        %v2241 = vlaneseq
        %v2242 = vshrl.u32 %v2241, 7
        %v2243 = vsub.s32 %v2240, %v2242
        %v2244 = vrot.slane %v2236, %v2243
        %v2246 = vunpack.c.l.s4 1983009808
        %v2247 = vunpack.c.0.s8 %v2246
        %v2248 = vlaneseq
        %v2249 = vshrl.u32 %v2248, 7
        %v2250 = vsub.s32 %v2247, %v2249
        %v2251 = vrot.slane %v2237, %v2250
        %v2252 = vcombine.low %v2244, %v2251
        %v2253 = vcombine.low %v1823, %v1831
        %v2254 = vcombine.low %v1830, %v1832
        %v2256 = vunpack.c.l.s4 1983009808
        %v2257 = vunpack.c.0.s8 %v2256
        %v2258 = vlaneseq
        %v2259 = vshrl.u32 %v2258, 7
        %v2260 = vsub.s32 %v2257, %v2259
        %v2261 = vrot.slane %v2253, %v2260
        %v2263 = vunpack.c.l.s4 1983009808
        %v2264 = vunpack.c.0.s8 %v2263
        %v2265 = vlaneseq
        %v2266 = vshrl.u32 %v2265, 7
        %v2267 = vsub.s32 %v2264, %v2266
        %v2268 = vrot.slane %v2254, %v2267
        %v2269 = vcombine.low %v2261, %v2268
        %v2270 = vcombine.low %v1840, %v1848
        %v2271 = vcombine.low %v1847, %v1856
        %v2273 = vunpack.c.l.s4 1983009808
        %v2274 = vunpack.c.0.s8 %v2273
        %v2275 = vlaneseq
        %v2276 = vshrl.u32 %v2275, 7
        %v2277 = vsub.s32 %v2274, %v2276
        %v2278 = vrot.slane %v2270, %v2277
        %v2280 = vunpack.c.l.s4 1983009808
        %v2281 = vunpack.c.0.s8 %v2280
        %v2282 = vlaneseq
        %v2283 = vshrl.u32 %v2282, 7
        %v2284 = vsub.s32 %v2281, %v2283
        %v2285 = vrot.slane %v2271, %v2284
        %v2286 = vcombine.low %v2278, %v2285
        %v2287 = vcombine.low %v1864, %v1863
        %v2288 = vcombine.low %v1865, %v1873
        %v2290 = vunpack.c.l.s4 1983009808
        %v2291 = vunpack.c.0.s8 %v2290
        %v2292 = vlaneseq
        %v2293 = vshrl.u32 %v2292, 7
        %v2294 = vsub.s32 %v2291, %v2293
        %v2295 = vrot.slane %v2287, %v2294
        %v2297 = vunpack.c.l.s4 1983009808
        %v2298 = vunpack.c.0.s8 %v2297
        %v2299 = vlaneseq
        %v2300 = vshrl.u32 %v2299, 7
        %v2301 = vsub.s32 %v2298, %v2300
        %v2302 = vrot.slane %v2288, %v2301
        %v2303 = vcombine.low %v2295, %v2302
        %v2304 = vcombine.low %v1881, %v1880
        %v2305 = vcombine.low %v1889, %v1897
        %v2307 = vunpack.c.l.s4 1983009808
        %v2308 = vunpack.c.0.s8 %v2307
        %v2309 = vlaneseq
        %v2310 = vshrl.u32 %v2309, 7
        %v2311 = vsub.s32 %v2308, %v2310
        %v2312 = vrot.slane %v2304, %v2311
        %v2314 = vunpack.c.l.s4 1983009808
        %v2315 = vunpack.c.0.s8 %v2314
        %v2316 = vlaneseq
        %v2317 = vshrl.u32 %v2316, 7
        %v2318 = vsub.s32 %v2315, %v2317
        %v2319 = vrot.slane %v2305, %v2318
        %v2320 = vcombine.low %v2312, %v2319
        %v2321 = vcombine.low %v1896, %v1898
        %v2322 = vcombine.low %v1906, %v1914
        %v2324 = vunpack.c.l.s4 1983009808
        %v2325 = vunpack.c.0.s8 %v2324
        %v2326 = vlaneseq
        %v2327 = vshrl.u32 %v2326, 7
        %v2328 = vsub.s32 %v2325, %v2327
        %v2329 = vrot.slane %v2321, %v2328
        %v2331 = vunpack.c.l.s4 1983009808
        %v2332 = vunpack.c.0.s8 %v2331
        %v2333 = vlaneseq
        %v2334 = vshrl.u32 %v2333, 7
        %v2335 = vsub.s32 %v2332, %v2334
        %v2336 = vrot.slane %v2322, %v2335
        %v2337 = vcombine.low %v2329, %v2336
        %v2338 = vcombine.low %v1913, %v1922
        %v2339 = vcombine.low %v1930, %v1929
        %v2341 = vunpack.c.l.s4 1983009808
        %v2342 = vunpack.c.0.s8 %v2341
        %v2343 = vlaneseq
        %v2344 = vshrl.u32 %v2343, 7
        %v2345 = vsub.s32 %v2342, %v2344
        %v2346 = vrot.slane %v2338, %v2345
        %v2348 = vunpack.c.l.s4 1983009808
        %v2349 = vunpack.c.0.s8 %v2348
        %v2350 = vlaneseq
        %v2351 = vshrl.u32 %v2350, 7
        %v2352 = vsub.s32 %v2349, %v2351
        %v2353 = vrot.slane %v2339, %v2352
        %v2354 = vcombine.low %v2346, %v2353
        %v2355 = vcombine.low %v1931, %v1939
        %v2356 = vcombine.low %v1947, %v1946
        %v2358 = vunpack.c.l.s4 1983009808
        %v2359 = vunpack.c.0.s8 %v2358
        %v2360 = vlaneseq
        %v2361 = vshrl.u32 %v2360, 7
        %v2362 = vsub.s32 %v2359, %v2361
        %v2363 = vrot.slane %v2355, %v2362
        %v2365 = vunpack.c.l.s4 1983009808
        %v2366 = vunpack.c.0.s8 %v2365
        %v2367 = vlaneseq
        %v2368 = vshrl.u32 %v2367, 7
        %v2369 = vsub.s32 %v2366, %v2368
        %v2370 = vrot.slane %v2356, %v2369
        %v2371 = vcombine.low %v2363, %v2370
        %v2372 = vcombine.low %v1955, %v1963
        %v2373 = vcombine.low %v1962, %v1964
        %v2375 = vunpack.c.l.s4 1983009808
        %v2376 = vunpack.c.0.s8 %v2375
        %v2377 = vlaneseq
        %v2378 = vshrl.u32 %v2377, 7
        %v2379 = vsub.s32 %v2376, %v2378
        %v2380 = vrot.slane %v2372, %v2379
        %v2382 = vunpack.c.l.s4 1983009808
        %v2383 = vunpack.c.0.s8 %v2382
        %v2384 = vlaneseq
        %v2385 = vshrl.u32 %v2384, 7
        %v2386 = vsub.s32 %v2383, %v2385
        %v2387 = vrot.slane %v2373, %v2386
        %v2388 = vcombine.low %v2380, %v2387
        %v2389 = vcombine.low %v1972, %v1980
        %v2390 = vcombine.low %v1979, %v1988
        %v2392 = vunpack.c.l.s4 1983009808
        %v2393 = vunpack.c.0.s8 %v2392
        %v2394 = vlaneseq
        %v2395 = vshrl.u32 %v2394, 7
        %v2396 = vsub.s32 %v2393, %v2395
        %v2397 = vrot.slane %v2389, %v2396
        %v2399 = vunpack.c.l.s4 1983009808
        %v2400 = vunpack.c.0.s8 %v2399
        %v2401 = vlaneseq
        %v2402 = vshrl.u32 %v2401, 7
        %v2403 = vsub.s32 %v2400, %v2402
        %v2404 = vrot.slane %v2390, %v2403
        %v2405 = vcombine.low %v2397, %v2404
        %v2406 = vcombine.low %v1996, %v1995
        %v2407 = vcombine.low %v1997, %v2005
        %v2409 = vunpack.c.l.s4 1983009808
        %v2410 = vunpack.c.0.s8 %v2409
        %v2411 = vlaneseq
        %v2412 = vshrl.u32 %v2411, 7
        %v2413 = vsub.s32 %v2410, %v2412
        %v2414 = vrot.slane %v2406, %v2413
        %v2416 = vunpack.c.l.s4 1983009808
        %v2417 = vunpack.c.0.s8 %v2416
        %v2418 = vlaneseq
        %v2419 = vshrl.u32 %v2418, 7
        %v2420 = vsub.s32 %v2417, %v2419
        %v2421 = vrot.slane %v2407, %v2420
        %v2422 = vcombine.low %v2414, %v2421
        %v2423 = vcombine.low %v2013, %v2012
        %v2425 = vunpack.c.l.s4 1983009808
        %v2426 = vunpack.c.0.s8 %v2425
        %v2427 = vlaneseq
        %v2428 = vshrl.u32 %v2427, 7
        %v2429 = vsub.s32 %v2426, %v2428
        %v2430 = vrot.slane %v2423, %v2429
        %vm2431 = vcmask 293888
        %v2433 = vsel %vm2431, %v2014, 0
        %v2435 = vsel %vm2431, %v2031, 0
        %v2437 = vsel %vm2431, %v2048, 0
        %v2439 = vsel %vm2431, %v2065, 0
        %v2441 = vsel %vm2431, %v2082, 0
        %v2443 = vsel %vm2431, %v2099, 0
        %v2445 = vsel %vm2431, %v2116, 0
        %v2447 = vsel %vm2431, %v2133, 0
        %v2449 = vsel %vm2431, %v2150, 0
        %v2451 = vsel %vm2431, %v2167, 0
        %v2453 = vsel %vm2431, %v2184, 0
        %v2455 = vsel %vm2431, %v2201, 0
        %v2457 = vsel %vm2431, %v2218, 0
        %v2459 = vsel %vm2431, %v2235, 0
        %v2461 = vsel %vm2431, %v2252, 0
        %v2463 = vsel %vm2431, %v2269, 0
        %v2465 = vsel %vm2431, %v2286, 0
        %v2467 = vsel %vm2431, %v2303, 0
        %v2469 = vsel %vm2431, %v2320, 0
        %v2471 = vsel %vm2431, %v2337, 0
        %v2473 = vsel %vm2431, %v2354, 0
        %v2475 = vsel %vm2431, %v2371, 0
        %v2477 = vsel %vm2431, %v2388, 0
        %v2479 = vsel %vm2431, %v2405, 0
        %v2481 = vsel %vm2431, %v2422, 0
        %v2483 = vsel %vm2431, %v2430, 0
        %2485 = vmatprep.subr.mxu0 0.0
        %2486 = vmatpush1.xpose.msra.mxu0 %v2465
        %2487 = vmatprep.subr.mxu0 0.0
        %2488 = vmatpush1.xpose.msra.mxu0 %v2463
        %2489 = vmatprep.subr.mxu0 0.0
        %2490 = vmatpush1.xpose.msra.mxu0 %v2461
        %2491 = vmatprep.subr.mxu0 0.0
        %2492 = vmatpush1.xpose.msra.mxu0 %v2459
        %2493 = vmatprep.subr.mxu0 0.0
        %2494 = vmatpush1.xpose.msra.mxu0 %v2457
        %2495 = vmatprep.subr.mxu0 0.0
        %2496 = vmatpush1.xpose.msra.mxu0 %v2455
        %2497 = vmatprep.subr.mxu0 0.0
        %2498 = vmatpush1.xpose.msra.mxu0 %v2453
        %2499 = vmatprep.subr.mxu0 0.0
        %2500 = vmatpush1.xpose.msra.mxu0 %v2451
        %2501 = vmatprep.subr.mxu0 0.0
        %2502 = vmatpush1.xpose.msra.mxu0 %v2449
        %2503 = vmatprep.subr.mxu0 0.0
        %2504 = vmatpush1.xpose.msra.mxu0 %v2447
        %2505 = vmatprep.subr.mxu0 0.0
        %2506 = vmatpush1.xpose.msra.mxu0 %v2445
        %2507 = vmatprep.subr.mxu0 0.0
        %2508 = vmatpush1.xpose.msra.mxu0 %v2443
        %2509 = vmatprep.subr.mxu0 0.0
        %2510 = vmatpush1.xpose.msra.mxu0 %v2441
        %2511 = vmatprep.subr.mxu0 0.0
        %2512 = vmatpush1.xpose.msra.mxu0 %v2439
        %2513 = vmatprep.subr.mxu0 0.0
        %2514 = vmatpush1.xpose.msra.mxu0 %v2437
        %2515 = vmatprep.subr.mxu0 0.0
        %2516 = vmatpush1.xpose.msra.mxu0 %v2435
        %2517 = vmatprep.subr.mxu0 0.0
        %2518 = vmatpush2.xpose.msra.mxu0 0.0
        %2519 = vmatprep.subr.mxu0 0.0
        %2520 = vmatpush2.xpose.msra.mxu0 0.0
        %2521 = vmatprep.subr.mxu0 0.0
        %2522 = vmatpush2.xpose.msra.mxu0 0.0
        %2523 = vmatprep.subr.mxu0 0.0
        %2524 = vmatpush2.xpose.msra.mxu0 0.0
        %2525 = vmatprep.subr.mxu0 0.0
        %2526 = vmatpush2.xpose.msra.mxu0 0.0
        %2527 = vmatprep.subr.mxu0 0.0
        %2528 = vmatpush2.xpose.msra.mxu0 0.0
        %2529 = vmatprep.subr.mxu0 0.0
        %2530 = vmatpush2.xpose.msra.mxu0 0.0
        %2531 = vmatprep.subr.mxu0 0.0
        %2532 = vmatpush2.xpose.msra.mxu0 %v2483
        %2533 = vmatprep.subr.mxu0 0.0
        %2534 = vmatpush2.xpose.msra.mxu0 %v2481
        %2535 = vmatprep.subr.mxu0 0.0
        %2536 = vmatpush2.xpose.msra.mxu0 %v2479
        %2537 = vmatprep.subr.mxu0 0.0
        %2538 = vmatpush2.xpose.msra.mxu0 %v2477
        %2539 = vmatprep.subr.mxu0 0.0
        %2540 = vmatpush2.xpose.msra.mxu0 %v2475
        %2541 = vmatprep.subr.mxu0 0.0
        %2542 = vmatpush2.xpose.msra.mxu0 %v2473
        %2543 = vmatprep.subr.mxu0 0.0
        %2544 = vmatpush2.xpose.msra.mxu0 %v2471
        %2545 = vmatprep.subr.mxu0 0.0
        %2546 = vmatpush2.xpose.msra.mxu0 %v2469
        %2547 = vmatprep.subr.mxu0 0.0
        %2548 = vmatpush2.xpose.msra.mxu0 %v2467
        %2549 = vmatprep.mubr.f32.mxu0 0.0
        %2550 = vmatmul.mubr.f32.gmra.mxu0 %v2433
        %v2551 = vpop.f32.mrf.mxu0
        %v2552 = vadd.f32 0.0, %v2551
        %v2553 = vpop.f32.mrf.mxu0
        %v2554 = vadd.f32 0.0, %v2553
        %2555 = vdwg.mxu0
        %2556 = vst [vmem:[%s136] sm:$0xff] %v2552
        %vm2557 = vcmask 556032
        %2558 = vst.msk [vmem:[%s136 + $0x8] sm:$0xff] %vm2557, %v2554
        %s2559 = sand.u32 %s71, 1
        %s2560 = scalar_lea.sflag [#allocation3], %s2559
        %s2561 = sand.u32 %s71, 1
        %s2562 = smul.addr %s2561, 16
        %s2563 = scalar_lea.vmem [#allocation2], %s2562
        // Predicated region
        $region29: #{tpu_custom_call.1} parent=27 // pred_check
          %p2564 = pneg %p81
        $region30: #{tpu_custom_call.1} parent=27 // pred_check_branch
          %2566 = sbr.rel (%p2564) target = $region32
        $region31: #{tpu_custom_call.1} parent=27 // pred_region
          %s2568 = ssub.s32 256, 256
          %2569 = vsyncadd %s2560, %s2568
          %s2570 = smul.addr %s16, 2
          %s2571 = smul.addr %s2570, 128
          %s2572 = scalar_lea.hbm %s2, %s2571
          %s2574 = sshll.u32 %s2563, 4
          %s2575 = int_to_ptr.vmem [resolvable:$true] %s2574
          %2577 = dma.vmem_to_hbm [thread:$0]  %s2575, 256, %s2572, %s2560
        $region32: #{tpu_custom_call.1} parent=27 // pred_fallthru
          _
      $region28: #{tpu_custom_call.1} parent=5 // pred_fallthru
        _
      %p2578 = scmp.le.s32.totalorder 2, %s11
      // Predicated region
      $region33: #{tpu_custom_call.1} parent=5 // pred_check
        %p2579 = pneg %p2578
      $region34: #{tpu_custom_call.1} parent=5 // pred_check_branch
        %2581 = sbr.rel (%p2579) target = $region36
      $region35: #{tpu_custom_call.1} parent=5 // pred_region
        %s2582 = ssub.s32 %s11, 2
        // Predicated region
        $region37: #{tpu_custom_call.1} parent=35 // pred_check
          %p2583 = pneg %p87
        $region38: #{tpu_custom_call.1} parent=35 // pred_check_branch
          %2585 = sbr.rel (%p2583) target = $region40
        $region39: #{tpu_custom_call.1} parent=35 // pred_region
          %s2586 = sand.u32 %s72, 1
          %s2587 = scalar_lea.sflag [#allocation3], %s2586
          %s2588 = sand.u32 %s72, 1
          %s2589 = smul.addr %s2588, 16
          %s2590 = scalar_lea.vmem [#allocation2], %s2589
          %2591 = dma.done %s2587, 256
        $region40: #{tpu_custom_call.1} parent=35 // pred_fallthru
          _
      $region36: #{tpu_custom_call.1} parent=5 // pred_fallthru
        _
    $region6: #{tpu_custom_call.1} parent=1 // loop_footer
      %s15 = sadd.s32 1, %s11
    $region7: #{tpu_custom_call.1} parent=1 // loop_footer_branch
      %10 = sbr.rel target = $region3
    $region8: #{tpu_custom_call.1} parent=1 // loop_exit
      _
    %2592 = vsyncpa [#allocation3], 1
    %s2593 = scalar_lea.sflag [#allocation3], 1
    %2594 = vsyncpa %s2593, 1

</llo_original>
